<compile_context>
chip_gen: v7x
topology: tpu7x:2x2x1
jax: 0.10.0
libtpu: 0.0.40
codegen_flags: <defaults>
</compile_context>

<pallas_src>
import jax
import jax.numpy as jnp
from jax.experimental import pallas as pl
from jax.experimental.pallas import tpu as pltpu


# ----------------------------------------------------------------------------
# Fused layer kernel: linear combine (+ optional ReLU relaxation) for one node
# ----------------------------------------------------------------------------
def _make_layer_kernel(n_in, V, W, T, activation):
    relu = activation == "relu"
    f32 = jnp.float32

    def kernel(wpos_ref, wneg_ref, bias_ref, iu_ref, io_ref, du_ref, do_ref,
               ou_ref, oo_ref, dou_ref, doo_ref):
        wp = wpos_ref[0]            # (n_in, 1)  >= 0
        wn = wneg_ref[0]            # (n_in, 1)  <= 0
        b = bias_ref[0]             # (1, 1)

        if relu:
            # ---- interval bounds of every *input* polynomial (one shared pass,
            #      perf feedback item #9) ----------------------------------------
            io_all = io_ref[...]    # (n_in, V, W, T)  over-approx inputs
            iu_all = iu_ref[...]    # (n_in, V, W, T)  under-approx inputs

            def term_interval(p):
                # per-term interval = product over V of [min_W, max_W] intervals,
                # poly interval = sum over terms (lane-axis reduce).
                rows0 = p[:, 0, :, :]                      # (n_in, W, T)
                lo = jnp.min(rows0, axis=1)                # (n_in, T)
                hi = jnp.max(rows0, axis=1)
                for v in range(1, V):
                    rv = p[:, v, :, :]
                    a = jnp.min(rv, axis=1)
                    c = jnp.max(rv, axis=1)
                    p1, p2, p3, p4 = lo * a, lo * c, hi * a, hi * c
                    lo = jnp.minimum(jnp.minimum(p1, p2), jnp.minimum(p3, p4))
                    hi = jnp.maximum(jnp.maximum(p1, p2), jnp.maximum(p3, p4))
                return (jnp.sum(lo, axis=-1, keepdims=True),
                        jnp.sum(hi, axis=-1, keepdims=True))   # (n_in, 1) each

            _, o_hi = term_interval(io_all)      # upper bound of each over-input
            u_lo, _ = term_interval(iu_all)      # lower bound of each under-input

            # Node bounds (exactly the factored form of ibf_minmax on the combined
            # polys, since wn <= 0 and wp >= 0):
            #   l = lower(sum wn*io + sum wp*iu + b),  u = upper(sum wp*io + sum wn*iu + b)
            l = jnp.sum(wn * o_hi + wp * u_lo, axis=0, keepdims=True) + b   # (1, 1)
            u = jnp.sum(wp * o_hi + wn * u_lo, axis=0, keepdims=True) + b   # (1, 1)

            dead = u <= 0.0
            stable = l >= 0.0
            diff = u - l
            denom = jnp.where(jnp.abs(diff) < 1e-12, 1.0, diff)   # eps-guarded
            lam = jnp.where(dead, 0.0, jnp.where(stable, 1.0, u / denom))
            mu = jnp.where(jnp.logical_or(dead, stable), 0.0, -l * u / denom)
            alpha = jnp.where(dead, 0.0,
                              jnp.where(stable, 1.0,
                                        jnp.where(u >= -l, 1.0, 0.0)))

            a_u = alpha            # scale of every v==0 coeff of the under poly
            a_o = lam              # scale of every v==0 coeff of the over  poly
            s_uo = wn * a_u        # under output, slab from over  inputs
            s_uu = wp * a_u        # under output, slab from under inputs
            s_oo = wp * a_o        # over  output, slab from over  inputs
            s_ou = wn * a_o        # over  output, slab from under inputs
            bias_u = a_u * b
            bias_o = a_o * b
        else:
            s_uo, s_uu, s_oo, s_ou = wn, wp, wp, wn
            bias_u = b
            bias_o = b

        # ---- copy-through + v==0 row scaling, lane-dense contiguous slabs ------
        # Term layout of every output poly:
        #   [ 2T slab per input i : (scaled over_i , scaled under_i) ]  ++  constants
        for i in range(n_in):
            c0 = 2 * i * T
            c1 = c0 + T
            c2 = c1 + T
            p_o = io_ref[i]                      # (V, W, T)
            p_u = iu_ref[i]
            if V > 1:
                # rows v>0 are passed through unchanged (pure copies, no VALU work)
                ou_ref[0, 1:, :, c0:c1] = p_o[1:]
                ou_ref[0, 1:, :, c1:c2] = p_u[1:]
                oo_ref[0, 1:, :, c0:c1] = p_o[1:]
                oo_ref[0, 1:, :, c1:c2] = p_u[1:]
            # only the v==0 row carries the (weight x relu) scalar factor
            ou_ref[0, 0, :, c0:c1] = p_o[0] * s_uo[i:i + 1, :]
            ou_ref[0, 0, :, c1:c2] = p_u[0] * s_uu[i:i + 1, :]
            oo_ref[0, 0, :, c0:c1] = p_o[0] * s_oo[i:i + 1, :]
            oo_ref[0, 0, :, c1:c2] = p_u[0] * s_ou[i:i + 1, :]

        # ---- constant terms -----------------------------------------------------
        cb = 2 * n_in * T
        one_col = jnp.ones((V, W, 1), f32)
        # bias constant term (add_with_constant), already scaled by the ReLU factor
        ou_ref[0, :, :, cb:cb + 1] = one_col
        oo_ref[0, :, :, cb:cb + 1] = one_col
        ou_ref[0, 0, :, cb:cb + 1] = jnp.broadcast_to(bias_u, (W, 1))
        oo_ref[0, 0, :, cb:cb + 1] = jnp.broadcast_to(bias_o, (W, 1))
        if relu:
            # appended ReLU constant: 0 for the under poly, mu for the over poly
            ou_ref[0, :, :, cb + 1:cb + 2] = one_col
            oo_ref[0, :, :, cb + 1:cb + 2] = one_col
            ou_ref[0, 0, :, cb + 1:cb + 2] = jnp.zeros((W, 1), f32)
            oo_ref[0, 0, :, cb + 1:cb + 2] = jnp.broadcast_to(mu, (W, 1))

        # ---- degree tracking (masked max over inputs with non-zero weights) ----
        du_all = du_ref[...]                     # (n_in, V)
        do_all = do_ref[...]
        maskn = (jnp.abs(wn) > 0.0).astype(f32)  # (n_in, 1)
        maskp = (jnp.abs(wp) > 0.0).astype(f32)
        d_u = jnp.maximum(jnp.max(maskn * do_all, axis=0, keepdims=True),
                          jnp.max(maskp * du_all, axis=0, keepdims=True))   # (1, V)
        d_o = jnp.maximum(jnp.max(maskp * do_all, axis=0, keepdims=True),
                          jnp.max(maskn * du_all, axis=0, keepdims=True))
        if relu:
            dou_ref[...] = (d_u * a_u).reshape(1, 1, V)
            doo_ref[...] = (d_o * jnp.where(dead, 0.0, 1.0)).reshape(1, 1, V)
        else:
            dou_ref[...] = d_u.reshape(1, 1, V)
            doo_ref[...] = d_o.reshape(1, 1, V)

    return kernel


def layer_forward(weights, biases, iu, io, du, do_, activation):
    """One LayerModule forward step (linear combine + optional fused ReLU)."""
    n_out, n_in = weights.shape
    n_in2, V, W, T = iu.shape
    assert n_in2 == n_in
    n_const = 2 if activation == "relu" else 1
    T_out = 2 * n_in * T + n_const

    wpos = jnp.maximum(weights, 0.0).astype(jnp.float32)[:, :, None]      # (n_out, n_in, 1)
    wneg = (-jnp.maximum(-weights, 0.0)).astype(jnp.float32)[:, :, None]
    bias = biases.astype(jnp.float32).reshape(n_out, 1, 1)

    kernel = _make_layer_kernel(n_in, V, W, T, activation)

    poly_in_spec = pl.BlockSpec((n_in, V, W, T), lambda o: (0, 0, 0, 0))   # resident
    deg_in_spec = pl.BlockSpec((n_in, V), lambda o: (0, 0))                # resident
    poly_out_spec = pl.BlockSpec((1, V, W, T_out), lambda o: (o, 0, 0, 0))
    deg_out_spec = pl.BlockSpec((1, 1, V), lambda o: (o, 0, 0))

    ou, oo, dou, doo = pl.pallas_call(
        kernel,
        grid=(n_out,),
        in_specs=[
            pl.BlockSpec((1, n_in, 1), lambda o: (o, 0, 0)),   # wpos (per node)
            pl.BlockSpec((1, n_in, 1), lambda o: (o, 0, 0)),   # wneg (per node)
            pl.BlockSpec((1, 1, 1), lambda o: (o, 0, 0)),      # bias (per node)
            poly_in_spec,                                       # under inputs
            poly_in_spec,                                       # over inputs
            deg_in_spec,                                        # under degrees
            deg_in_spec,                                        # over degrees
        ],
        out_specs=(poly_out_spec, poly_out_spec, deg_out_spec, deg_out_spec),
        out_shape=(
            jax.ShapeDtypeStruct((n_out, V, W, T_out), jnp.float32),
            jax.ShapeDtypeStruct((n_out, V, W, T_out), jnp.float32),
            jax.ShapeDtypeStruct((n_out, 1, V), jnp.float32),
            jax.ShapeDtypeStruct((n_out, 1, V), jnp.float32),
        ),
        compiler_params=pltpu.CompilerParams(
            dimension_semantics=("parallel",),        # megacore sharding on v7x
            vmem_limit_bytes=48 * 1024 * 1024,        # explicit limit w/ headroom
        ),
    )(wpos, wneg, bias, iu, io, du, do_)

    return ou, oo, dou.reshape(n_out, V), doo.reshape(n_out, V)


# ----------------------------------------------------------------------------
# NetworkModule forward (glue)
# ----------------------------------------------------------------------------
def make_ibf_inputs(n_vars, intervals):
    """Input polynomial j = x_j over [l_j, u_j] in IBF form: (n_vars, V, W=2, T=1)."""
    intervals = jnp.asarray(intervals, jnp.float32)             # (n_vars, 2)
    sel = jnp.eye(n_vars, dtype=bool)[:, :, None]               # (poly, var, 1)
    rows = jnp.where(sel, intervals[:, None, :],
                     jnp.ones((n_vars, n_vars, 2), jnp.float32))
    return rows[:, :, :, None]                                  # term axis last


def network_forward(n_vars, intervals, network_weights, network_biases,
                    lin_itr_numb=0):
    # TODO(synk): lin_itr_numb > 0 path (upper/lower_linear_ibf) not available.
    iu = io = make_ibf_inputs(n_vars, intervals)
    du = do_ = jnp.ones((n_vars, n_vars), jnp.float32)

    n_layers = len(network_weights)
    for li in range(n_layers):
        activation = "relu" if li != n_layers - 1 else "linear"
        iu, io, du, do_ = layer_forward(network_weights[li], network_biases[li],
                                        iu, io, du, do_, activation)
    return iu, io


# ----------------------------------------------------------------------------
if __name__ == "__main__":
    key = jax.random.PRNGKey(0)
    n_vars = 2
    network_size = [2, 4, 2]            # input vars, hidden, output
    intervals = jnp.array([[-1.0, 1.0], [-1.0, 1.0]], jnp.float32)

    k1, k2, k3, k4 = jax.random.split(key, 4)
    network_weights = [
        jax.random.normal(k1, (network_size[1], network_size[0]), jnp.float32),
        jax.random.normal(k2, (network_size[2], network_size[1]), jnp.float32),
    ]
    network_biases = [
        jax.random.normal(k3, (network_size[1],), jnp.float32),
        jax.random.normal(k4, (network_size[2],), jnp.float32),
    ]

    out_under, out_over = network_forward(
        n_vars, intervals, network_weights, network_biases, lin_itr_numb=0)
    jax.block_until_ready((out_under, out_over))

    assert out_under.shape == out_over.shape
    assert out_under.shape == (network_size[2], n_vars, 2, 2 * network_size[1] * 6 + 1)
    assert bool(jnp.all(jnp.isfinite(out_under)))
    assert bool(jnp.all(jnp.isfinite(out_over)))
    print("KERNEL_OK")
</pallas_src>

<mosaic_0001>
module attributes {stable_mosaic.version = 11 : i64} {
  func.func @kernel(%arg0: i32, %arg1: memref<1x2x1xf32, #tpu.memory_space<vmem>>, %arg2: memref<1x2x1xf32, #tpu.memory_space<vmem>>, %arg3: memref<1x1x1xf32, #tpu.memory_space<vmem>>, %arg4: memref<2x2x2x1xf32, #tpu.memory_space<vmem>>, %arg5: memref<2x2x2x1xf32, #tpu.memory_space<vmem>>, %arg6: memref<2x2xf32, #tpu.memory_space<vmem>>, %arg7: memref<2x2xf32, #tpu.memory_space<vmem>>, %arg8: memref<1x2x2x6xf32, #tpu.memory_space<vmem>>, %arg9: memref<1x2x2x6xf32, #tpu.memory_space<vmem>>, %arg10: memref<1x1x2xf32, #tpu.memory_space<vmem>>, %arg11: memref<1x1x2xf32, #tpu.memory_space<vmem>>) attributes {dimension_semantics = [#tpu.dimension_semantics<parallel>], iteration_bounds = array<i64: 4>, scalar_prefetch = 0 : i64, scratch_operands = 0 : i64, tpu.core_type = #tpu.core_type<tc>, window_params = [{transform_indices = @transform_0, window_bounds = array<i64: 1, 2, 1>}, {transform_indices = @transform_1, window_bounds = array<i64: 1, 2, 1>}, {transform_indices = @transform_2, window_bounds = array<i64: 1, 1, 1>}, {pipeline_mode = #tpu.pipeline_mode<synchronous>, transform_indices = @transform_3, window_bounds = array<i64: 2, 2, 2, 1>}, {pipeline_mode = #tpu.pipeline_mode<synchronous>, transform_indices = @transform_4, window_bounds = array<i64: 2, 2, 2, 1>}, {pipeline_mode = #tpu.pipeline_mode<synchronous>, transform_indices = @transform_5, window_bounds = array<i64: 2, 2>}, {pipeline_mode = #tpu.pipeline_mode<synchronous>, transform_indices = @transform_6, window_bounds = array<i64: 2, 2>}, {transform_indices = @transform_7, window_bounds = array<i64: 1, 2, 2, 6>}, {transform_indices = @transform_8, window_bounds = array<i64: 1, 2, 2, 6>}, {transform_indices = @transform_9, window_bounds = array<i64: 1, 1, 2>}, {transform_indices = @transform_10, window_bounds = array<i64: 1, 1, 2>}]} {
    %c0 = arith.constant 0 : index
    %c0_0 = arith.constant 0 : index
    %c0_1 = arith.constant 0 : index
    %0 = vector.load %arg1[%c0, %c0_0, %c0_1] : memref<1x2x1xf32, #tpu.memory_space<vmem>>, vector<1x2x1xf32>
    %1 = vector.shape_cast %0 : vector<1x2x1xf32> to vector<2x1xf32>
    %c0_2 = arith.constant 0 : index
    %c0_3 = arith.constant 0 : index
    %c0_4 = arith.constant 0 : index
    %2 = vector.load %arg2[%c0_2, %c0_3, %c0_4] : memref<1x2x1xf32, #tpu.memory_space<vmem>>, vector<1x2x1xf32>
    %3 = vector.shape_cast %2 : vector<1x2x1xf32> to vector<2x1xf32>
    %c0_5 = arith.constant 0 : index
    %c0_6 = arith.constant 0 : index
    %c0_7 = arith.constant 0 : index
    %4 = vector.load %arg3[%c0_5, %c0_6, %c0_7] : memref<1x1x1xf32, #tpu.memory_space<vmem>>, vector<1x1x1xf32>
    %5 = vector.shape_cast %4 : vector<1x1x1xf32> to vector<1x1xf32>
    %c0_8 = arith.constant 0 : index
    %c0_9 = arith.constant 0 : index
    %c0_10 = arith.constant 0 : index
    %c0_11 = arith.constant 0 : index
    %6 = vector.load %arg5[%c0_8, %c0_9, %c0_10, %c0_11] : memref<2x2x2x1xf32, #tpu.memory_space<vmem>>, vector<2x2x2x1xf32>
    %c0_12 = arith.constant 0 : index
    %c0_13 = arith.constant 0 : index
    %c0_14 = arith.constant 0 : index
    %c0_15 = arith.constant 0 : index
    %7 = vector.load %arg4[%c0_12, %c0_13, %c0_14, %c0_15] : memref<2x2x2x1xf32, #tpu.memory_space<vmem>>, vector<2x2x2x1xf32>
    %8 = vector.extract_strided_slice %6 {offsets = [0, 0, 0, 0], sizes = [2, 1, 2, 1], strides = [1, 1, 1, 1]} : vector<2x2x2x1xf32> to vector<2x1x2x1xf32>
    %9 = vector.shape_cast %8 : vector<2x1x2x1xf32> to vector<2x2x1xf32>
    %cst = arith.constant dense<0x7F800000> : vector<2x1xf32>
    %10 = vector.multi_reduction <minimumf>, %9, %cst [1] : vector<2x2x1xf32> to vector<2x1xf32>
    %cst_16 = arith.constant dense<0xFF800000> : vector<2x1xf32>
    %11 = vector.multi_reduction <maximumf>, %9, %cst_16 [1] : vector<2x2x1xf32> to vector<2x1xf32>
    %12 = vector.extract_strided_slice %6 {offsets = [0, 1, 0, 0], sizes = [2, 1, 2, 1], strides = [1, 1, 1, 1]} : vector<2x2x2x1xf32> to vector<2x1x2x1xf32>
    %13 = vector.shape_cast %12 : vector<2x1x2x1xf32> to vector<2x2x1xf32>
    %cst_17 = arith.constant dense<0x7F800000> : vector<2x1xf32>
    %14 = vector.multi_reduction <minimumf>, %13, %cst_17 [1] : vector<2x2x1xf32> to vector<2x1xf32>
    %cst_18 = arith.constant dense<0xFF800000> : vector<2x1xf32>
    %15 = vector.multi_reduction <maximumf>, %13, %cst_18 [1] : vector<2x2x1xf32> to vector<2x1xf32>
    %16 = arith.mulf %10, %14 : vector<2x1xf32>
    %17 = arith.mulf %10, %15 : vector<2x1xf32>
    %18 = arith.mulf %11, %14 : vector<2x1xf32>
    %19 = arith.mulf %11, %15 : vector<2x1xf32>
    %20 = arith.maximumf %16, %17 : vector<2x1xf32>
    %21 = arith.maximumf %18, %19 : vector<2x1xf32>
    %22 = arith.maximumf %20, %21 : vector<2x1xf32>
    %cst_19 = arith.constant dense<0.000000e+00> : vector<2xf32>
    %23 = vector.multi_reduction <add>, %22, %cst_19 [1] : vector<2x1xf32> to vector<2xf32>
    %24 = vector.shape_cast %23 : vector<2xf32> to vector<2x1xf32>
    %25 = vector.extract_strided_slice %7 {offsets = [0, 0, 0, 0], sizes = [2, 1, 2, 1], strides = [1, 1, 1, 1]} : vector<2x2x2x1xf32> to vector<2x1x2x1xf32>
    %26 = vector.shape_cast %25 : vector<2x1x2x1xf32> to vector<2x2x1xf32>
    %cst_20 = arith.constant dense<0x7F800000> : vector<2x1xf32>
    %27 = vector.multi_reduction <minimumf>, %26, %cst_20 [1] : vector<2x2x1xf32> to vector<2x1xf32>
    %cst_21 = arith.constant dense<0xFF800000> : vector<2x1xf32>
    %28 = vector.multi_reduction <maximumf>, %26, %cst_21 [1] : vector<2x2x1xf32> to vector<2x1xf32>
    %29 = vector.extract_strided_slice %7 {offsets = [0, 1, 0, 0], sizes = [2, 1, 2, 1], strides = [1, 1, 1, 1]} : vector<2x2x2x1xf32> to vector<2x1x2x1xf32>
    %30 = vector.shape_cast %29 : vector<2x1x2x1xf32> to vector<2x2x1xf32>
    %cst_22 = arith.constant dense<0x7F800000> : vector<2x1xf32>
    %31 = vector.multi_reduction <minimumf>, %30, %cst_22 [1] : vector<2x2x1xf32> to vector<2x1xf32>
    %cst_23 = arith.constant dense<0xFF800000> : vector<2x1xf32>
    %32 = vector.multi_reduction <maximumf>, %30, %cst_23 [1] : vector<2x2x1xf32> to vector<2x1xf32>
    %33 = arith.mulf %27, %31 : vector<2x1xf32>
    %34 = arith.mulf %27, %32 : vector<2x1xf32>
    %35 = arith.mulf %28, %31 : vector<2x1xf32>
    %36 = arith.mulf %28, %32 : vector<2x1xf32>
    %37 = arith.minimumf %33, %34 : vector<2x1xf32>
    %38 = arith.minimumf %35, %36 : vector<2x1xf32>
    %39 = arith.minimumf %37, %38 : vector<2x1xf32>
    %cst_24 = arith.constant dense<0.000000e+00> : vector<2xf32>
    %40 = vector.multi_reduction <add>, %39, %cst_24 [1] : vector<2x1xf32> to vector<2xf32>
    %41 = vector.shape_cast %40 : vector<2xf32> to vector<2x1xf32>
    %42 = arith.mulf %3, %24 : vector<2x1xf32>
    %43 = arith.mulf %1, %41 : vector<2x1xf32>
    %44 = arith.addf %42, %43 : vector<2x1xf32>
    %cst_25 = arith.constant dense<0.000000e+00> : vector<1xf32>
    %45 = vector.multi_reduction <add>, %44, %cst_25 [0] : vector<2x1xf32> to vector<1xf32>
    %46 = vector.shape_cast %45 : vector<1xf32> to vector<1x1xf32>
    %47 = arith.addf %46, %5 : vector<1x1xf32>
    %48 = arith.mulf %1, %24 : vector<2x1xf32>
    %49 = arith.mulf %3, %41 : vector<2x1xf32>
    %50 = arith.addf %48, %49 : vector<2x1xf32>
    %cst_26 = arith.constant dense<0.000000e+00> : vector<1xf32>
    %51 = vector.multi_reduction <add>, %50, %cst_26 [0] : vector<2x1xf32> to vector<1xf32>
    %52 = vector.shape_cast %51 : vector<1xf32> to vector<1x1xf32>
    %53 = arith.addf %52, %5 : vector<1x1xf32>
    %cst_27 = arith.constant 0.000000e+00 : f32
    %54 = vector.broadcast %cst_27 : f32 to vector<1x1xf32>
    %55 = arith.cmpf ole, %53, %54 : vector<1x1xf32>
    %cst_28 = arith.constant 0.000000e+00 : f32
    %56 = vector.broadcast %cst_28 : f32 to vector<1x1xf32>
    %57 = arith.cmpf oge, %47, %56 : vector<1x1xf32>
    %58 = arith.subf %53, %47 : vector<1x1xf32>
    %59 = math.absf %58 : vector<1x1xf32>
    %cst_29 = arith.constant 9.99999996E-13 : f32
    %60 = vector.broadcast %cst_29 : f32 to vector<1x1xf32>
    %61 = arith.cmpf olt, %59, %60 : vector<1x1xf32>
    %cst_30 = arith.constant 1.000000e+00 : f32
    %62 = vector.broadcast %cst_30 : f32 to vector<1x1xf32>
    %63 = arith.select %61, %62, %58 : vector<1x1xi1>, vector<1x1xf32>
    %64 = arith.divf %53, %63 : vector<1x1xf32>
    %cst_31 = arith.constant 1.000000e+00 : f32
    %65 = vector.broadcast %cst_31 : f32 to vector<1x1xf32>
    %66 = arith.select %57, %65, %64 : vector<1x1xi1>, vector<1x1xf32>
    %cst_32 = arith.constant 0.000000e+00 : f32
    %67 = vector.broadcast %cst_32 : f32 to vector<1x1xf32>
    %68 = arith.select %55, %67, %66 : vector<1x1xi1>, vector<1x1xf32>
    %69 = arith.ori %55, %57 : vector<1x1xi1>
    %cst_33 = arith.constant 0.000000e+00 : f32
    %70 = vector.broadcast %cst_33 : f32 to vector<1x1xf32>
    %71 = arith.subf %70, %47 : vector<1x1xf32>
    %72 = arith.mulf %71, %53 : vector<1x1xf32>
    %73 = arith.divf %72, %63 : vector<1x1xf32>
    %cst_34 = arith.constant 0.000000e+00 : f32
    %74 = vector.broadcast %cst_34 : f32 to vector<1x1xf32>
    %75 = arith.select %69, %74, %73 : vector<1x1xi1>, vector<1x1xf32>
    %cst_35 = arith.constant 0.000000e+00 : f32
    %76 = vector.broadcast %cst_35 : f32 to vector<1x1xf32>
    %77 = arith.subf %76, %47 : vector<1x1xf32>
    %78 = arith.cmpf oge, %53, %77 : vector<1x1xf32>
    %cst_36 = arith.constant 1.000000e+00 : f32
    %cst_37 = arith.constant 0.000000e+00 : f32
    %79 = vector.broadcast %cst_36 : f32 to vector<1x1xf32>
    %80 = vector.broadcast %cst_37 : f32 to vector<1x1xf32>
    %81 = arith.select %78, %79, %80 : vector<1x1xi1>, vector<1x1xf32>
    %cst_38 = arith.constant 1.000000e+00 : f32
    %82 = vector.broadcast %cst_38 : f32 to vector<1x1xf32>
    %83 = arith.select %57, %82, %81 : vector<1x1xi1>, vector<1x1xf32>
    %cst_39 = arith.constant 0.000000e+00 : f32
    %84 = vector.broadcast %cst_39 : f32 to vector<1x1xf32>
    %85 = arith.select %55, %84, %83 : vector<1x1xi1>, vector<1x1xf32>
    %86 = vector.broadcast %85 : vector<1x1xf32> to vector<2x1xf32>
    %87 = arith.mulf %3, %86 : vector<2x1xf32>
    %88 = vector.broadcast %85 : vector<1x1xf32> to vector<2x1xf32>
    %89 = arith.mulf %1, %88 : vector<2x1xf32>
    %90 = vector.broadcast %68 : vector<1x1xf32> to vector<2x1xf32>
    %91 = arith.mulf %1, %90 : vector<2x1xf32>
    %92 = vector.broadcast %68 : vector<1x1xf32> to vector<2x1xf32>
    %93 = arith.mulf %3, %92 : vector<2x1xf32>
    %94 = arith.mulf %85, %5 : vector<1x1xf32>
    %95 = arith.mulf %68, %5 : vector<1x1xf32>
    %c0_40 = arith.constant 0 : index
    %c0_41 = arith.constant 0 : index
    %c0_42 = arith.constant 0 : index
    %c0_43 = arith.constant 0 : index
    %96 = vector.load %arg5[%c0_40, %c0_41, %c0_42, %c0_43] : memref<2x2x2x1xf32, #tpu.memory_space<vmem>>, vector<1x2x2x1xf32>
    %97 = vector.shape_cast %96 : vector<1x2x2x1xf32> to vector<2x2x1xf32>
    %c0_44 = arith.constant 0 : index
    %c0_45 = arith.constant 0 : index
    %c0_46 = arith.constant 0 : index
    %c0_47 = arith.constant 0 : index
    %98 = vector.load %arg4[%c0_44, %c0_45, %c0_46, %c0_47] : memref<2x2x2x1xf32, #tpu.memory_space<vmem>>, vector<1x2x2x1xf32>
    %99 = vector.shape_cast %98 : vector<1x2x2x1xf32> to vector<2x2x1xf32>
    %100 = vector.extract_strided_slice %97 {offsets = [1, 0, 0], sizes = [1, 2, 1], strides = [1, 1, 1]} : vector<2x2x1xf32> to vector<1x2x1xf32>
    %c0_48 = arith.constant 0 : index
    %c1 = arith.constant 1 : index
    %c0_49 = arith.constant 0 : index
    %c0_50 = arith.constant 0 : index
    %101 = vector.load %arg8[%c0_48, %c1, %c0_49, %c0_50] : memref<1x2x2x6xf32, #tpu.memory_space<vmem>>, vector<1x1x2x1xf32>
    %102 = vector.shape_cast %101 : vector<1x1x2x1xf32> to vector<1x2x1xf32>
    %103 = vector.shape_cast %100 : vector<1x2x1xf32> to vector<1x1x2x1xf32>
    tpu.vector_store %arg8[%c0_48, %c1, %c0_49, %c0_50], %103 {strides = array<i32>} : memref<1x2x2x6xf32, #tpu.memory_space<vmem>>, vector<1x1x2x1xf32>,
    %104 = vector.extract_strided_slice %99 {offsets = [1, 0, 0], sizes = [1, 2, 1], strides = [1, 1, 1]} : vector<2x2x1xf32> to vector<1x2x1xf32>
    %c0_51 = arith.constant 0 : index
    %c1_52 = arith.constant 1 : index
    %c0_53 = arith.constant 0 : index
    %c1_54 = arith.constant 1 : index
    %105 = vector.load %arg8[%c0_51, %c1_52, %c0_53, %c1_54] : memref<1x2x2x6xf32, #tpu.memory_space<vmem>>, vector<1x1x2x1xf32>
    %106 = vector.shape_cast %105 : vector<1x1x2x1xf32> to vector<1x2x1xf32>
    %107 = vector.shape_cast %104 : vector<1x2x1xf32> to vector<1x1x2x1xf32>
    tpu.vector_store %arg8[%c0_51, %c1_52, %c0_53, %c1_54], %107 {strides = array<i32>} : memref<1x2x2x6xf32, #tpu.memory_space<vmem>>, vector<1x1x2x1xf32>,
    %108 = vector.extract_strided_slice %97 {offsets = [1, 0, 0], sizes = [1, 2, 1], strides = [1, 1, 1]} : vector<2x2x1xf32> to vector<1x2x1xf32>
    %c0_55 = arith.constant 0 : index
    %c1_56 = arith.constant 1 : index
    %c0_57 = arith.constant 0 : index
    %c0_58 = arith.constant 0 : index
    %109 = vector.load %arg9[%c0_55, %c1_56, %c0_57, %c0_58] : memref<1x2x2x6xf32, #tpu.memory_space<vmem>>, vector<1x1x2x1xf32>
    %110 = vector.shape_cast %109 : vector<1x1x2x1xf32> to vector<1x2x1xf32>
    %111 = vector.shape_cast %108 : vector<1x2x1xf32> to vector<1x1x2x1xf32>
    tpu.vector_store %arg9[%c0_55, %c1_56, %c0_57, %c0_58], %111 {strides = array<i32>} : memref<1x2x2x6xf32, #tpu.memory_space<vmem>>, vector<1x1x2x1xf32>,
    %112 = vector.extract_strided_slice %99 {offsets = [1, 0, 0], sizes = [1, 2, 1], strides = [1, 1, 1]} : vector<2x2x1xf32> to vector<1x2x1xf32>
    %c0_59 = arith.constant 0 : index
    %c1_60 = arith.constant 1 : index
    %c0_61 = arith.constant 0 : index
    %c1_62 = arith.constant 1 : index
    %113 = vector.load %arg9[%c0_59, %c1_60, %c0_61, %c1_62] : memref<1x2x2x6xf32, #tpu.memory_space<vmem>>, vector<1x1x2x1xf32>
    %114 = vector.shape_cast %113 : vector<1x1x2x1xf32> to vector<1x2x1xf32>
    %115 = vector.shape_cast %112 : vector<1x2x1xf32> to vector<1x1x2x1xf32>
    tpu.vector_store %arg9[%c0_59, %c1_60, %c0_61, %c1_62], %115 {strides = array<i32>} : memref<1x2x2x6xf32, #tpu.memory_space<vmem>>, vector<1x1x2x1xf32>,
    %116 = vector.extract_strided_slice %97 {offsets = [0, 0, 0], sizes = [1, 2, 1], strides = [1, 1, 1]} : vector<2x2x1xf32> to vector<1x2x1xf32>
    %117 = vector.shape_cast %116 : vector<1x2x1xf32> to vector<2x1xf32>
    %118 = vector.extract_strided_slice %87 {offsets = [0, 0], sizes = [1, 1], strides = [1, 1]} : vector<2x1xf32> to vector<1x1xf32>
    %119 = vector.broadcast %118 : vector<1x1xf32> to vector<2x1xf32>
    %120 = arith.mulf %117, %119 : vector<2x1xf32>
    %c0_63 = arith.constant 0 : index
    %c0_64 = arith.constant 0 : index
    %c0_65 = arith.constant 0 : index
    %c0_66 = arith.constant 0 : index
    %121 = vector.load %arg8[%c0_63, %c0_64, %c0_65, %c0_66] : memref<1x2x2x6xf32, #tpu.memory_space<vmem>>, vector<1x1x2x1xf32>
    %122 = vector.shape_cast %121 : vector<1x1x2x1xf32> to vector<2x1xf32>
    %123 = vector.shape_cast %120 : vector<2x1xf32> to vector<1x1x2x1xf32>
    tpu.vector_store %arg8[%c0_63, %c0_64, %c0_65, %c0_66], %123 {strides = array<i32>} : memref<1x2x2x6xf32, #tpu.memory_space<vmem>>, vector<1x1x2x1xf32>,
    %124 = vector.extract_strided_slice %99 {offsets = [0, 0, 0], sizes = [1, 2, 1], strides = [1, 1, 1]} : vector<2x2x1xf32> to vector<1x2x1xf32>
    %125 = vector.shape_cast %124 : vector<1x2x1xf32> to vector<2x1xf32>
    %126 = vector.extract_strided_slice %89 {offsets = [0, 0], sizes = [1, 1], strides = [1, 1]} : vector<2x1xf32> to vector<1x1xf32>
    %127 = vector.broadcast %126 : vector<1x1xf32> to vector<2x1xf32>
    %128 = arith.mulf %125, %127 : vector<2x1xf32>
    %c0_67 = arith.constant 0 : index
    %c0_68 = arith.constant 0 : index
    %c0_69 = arith.constant 0 : index
    %c1_70 = arith.constant 1 : index
    %129 = vector.load %arg8[%c0_67, %c0_68, %c0_69, %c1_70] : memref<1x2x2x6xf32, #tpu.memory_space<vmem>>, vector<1x1x2x1xf32>
    %130 = vector.shape_cast %129 : vector<1x1x2x1xf32> to vector<2x1xf32>
    %131 = vector.shape_cast %128 : vector<2x1xf32> to vector<1x1x2x1xf32>
    tpu.vector_store %arg8[%c0_67, %c0_68, %c0_69, %c1_70], %131 {strides = array<i32>} : memref<1x2x2x6xf32, #tpu.memory_space<vmem>>, vector<1x1x2x1xf32>,
    %132 = vector.extract_strided_slice %97 {offsets = [0, 0, 0], sizes = [1, 2, 1], strides = [1, 1, 1]} : vector<2x2x1xf32> to vector<1x2x1xf32>
    %133 = vector.shape_cast %132 : vector<1x2x1xf32> to vector<2x1xf32>
    %134 = vector.extract_strided_slice %91 {offsets = [0, 0], sizes = [1, 1], strides = [1, 1]} : vector<2x1xf32> to vector<1x1xf32>
    %135 = vector.broadcast %134 : vector<1x1xf32> to vector<2x1xf32>
    %136 = arith.mulf %133, %135 : vector<2x1xf32>
    %c0_71 = arith.constant 0 : index
    %c0_72 = arith.constant 0 : index
    %c0_73 = arith.constant 0 : index
    %c0_74 = arith.constant 0 : index
    %137 = vector.load %arg9[%c0_71, %c0_72, %c0_73, %c0_74] : memref<1x2x2x6xf32, #tpu.memory_space<vmem>>, vector<1x1x2x1xf32>
    %138 = vector.shape_cast %137 : vector<1x1x2x1xf32> to vector<2x1xf32>
    %139 = vector.shape_cast %136 : vector<2x1xf32> to vector<1x1x2x1xf32>
    tpu.vector_store %arg9[%c0_71, %c0_72, %c0_73, %c0_74], %139 {strides = array<i32>} : memref<1x2x2x6xf32, #tpu.memory_space<vmem>>, vector<1x1x2x1xf32>,
    %140 = vector.extract_strided_slice %99 {offsets = [0, 0, 0], sizes = [1, 2, 1], strides = [1, 1, 1]} : vector<2x2x1xf32> to vector<1x2x1xf32>
    %141 = vector.shape_cast %140 : vector<1x2x1xf32> to vector<2x1xf32>
    %142 = vector.extract_strided_slice %93 {offsets = [0, 0], sizes = [1, 1], strides = [1, 1]} : vector<2x1xf32> to vector<1x1xf32>
    %143 = vector.broadcast %142 : vector<1x1xf32> to vector<2x1xf32>
    %144 = arith.mulf %141, %143 : vector<2x1xf32>
    %c0_75 = arith.constant 0 : index
    %c0_76 = arith.constant 0 : index
    %c0_77 = arith.constant 0 : index
    %c1_78 = arith.constant 1 : index
    %145 = vector.load %arg9[%c0_75, %c0_76, %c0_77, %c1_78] : memref<1x2x2x6xf32, #tpu.memory_space<vmem>>, vector<1x1x2x1xf32>
    %146 = vector.shape_cast %145 : vector<1x1x2x1xf32> to vector<2x1xf32>
    %147 = vector.shape_cast %144 : vector<2x1xf32> to vector<1x1x2x1xf32>
    tpu.vector_store %arg9[%c0_75, %c0_76, %c0_77, %c1_78], %147 {strides = array<i32>} : memref<1x2x2x6xf32, #tpu.memory_space<vmem>>, vector<1x1x2x1xf32>,
    %c1_79 = arith.constant 1 : index
    %c0_80 = arith.constant 0 : index
    %c0_81 = arith.constant 0 : index
    %c0_82 = arith.constant 0 : index
    %148 = vector.load %arg5[%c1_79, %c0_80, %c0_81, %c0_82] : memref<2x2x2x1xf32, #tpu.memory_space<vmem>>, vector<1x2x2x1xf32>
    %149 = vector.shape_cast %148 : vector<1x2x2x1xf32> to vector<2x2x1xf32>
    %c1_83 = arith.constant 1 : index
    %c0_84 = arith.constant 0 : index
    %c0_85 = arith.constant 0 : index
    %c0_86 = arith.constant 0 : index
    %150 = vector.load %arg4[%c1_83, %c0_84, %c0_85, %c0_86] : memref<2x2x2x1xf32, #tpu.memory_space<vmem>>, vector<1x2x2x1xf32>
    %151 = vector.shape_cast %150 : vector<1x2x2x1xf32> to vector<2x2x1xf32>
    %152 = vector.extract_strided_slice %149 {offsets = [1, 0, 0], sizes = [1, 2, 1], strides = [1, 1, 1]} : vector<2x2x1xf32> to vector<1x2x1xf32>
    %c0_87 = arith.constant 0 : index
    %c1_88 = arith.constant 1 : index
    %c0_89 = arith.constant 0 : index
    %c2 = arith.constant 2 : index
    %153 = vector.load %arg8[%c0_87, %c1_88, %c0_89, %c2] : memref<1x2x2x6xf32, #tpu.memory_space<vmem>>, vector<1x1x2x1xf32>
    %154 = vector.shape_cast %153 : vector<1x1x2x1xf32> to vector<1x2x1xf32>
    %155 = vector.shape_cast %152 : vector<1x2x1xf32> to vector<1x1x2x1xf32>
    tpu.vector_store %arg8[%c0_87, %c1_88, %c0_89, %c2], %155 {strides = array<i32>} : memref<1x2x2x6xf32, #tpu.memory_space<vmem>>, vector<1x1x2x1xf32>,
    %156 = vector.extract_strided_slice %151 {offsets = [1, 0, 0], sizes = [1, 2, 1], strides = [1, 1, 1]} : vector<2x2x1xf32> to vector<1x2x1xf32>
    %c0_90 = arith.constant 0 : index
    %c1_91 = arith.constant 1 : index
    %c0_92 = arith.constant 0 : index
    %c3 = arith.constant 3 : index
    %157 = vector.load %arg8[%c0_90, %c1_91, %c0_92, %c3] : memref<1x2x2x6xf32, #tpu.memory_space<vmem>>, vector<1x1x2x1xf32>
    %158 = vector.shape_cast %157 : vector<1x1x2x1xf32> to vector<1x2x1xf32>
    %159 = vector.shape_cast %156 : vector<1x2x1xf32> to vector<1x1x2x1xf32>
    tpu.vector_store %arg8[%c0_90, %c1_91, %c0_92, %c3], %159 {strides = array<i32>} : memref<1x2x2x6xf32, #tpu.memory_space<vmem>>, vector<1x1x2x1xf32>,
    %160 = vector.extract_strided_slice %149 {offsets = [1, 0, 0], sizes = [1, 2, 1], strides = [1, 1, 1]} : vector<2x2x1xf32> to vector<1x2x1xf32>
    %c0_93 = arith.constant 0 : index
    %c1_94 = arith.constant 1 : index
    %c0_95 = arith.constant 0 : index
    %c2_96 = arith.constant 2 : index
    %161 = vector.load %arg9[%c0_93, %c1_94, %c0_95, %c2_96] : memref<1x2x2x6xf32, #tpu.memory_space<vmem>>, vector<1x1x2x1xf32>
    %162 = vector.shape_cast %161 : vector<1x1x2x1xf32> to vector<1x2x1xf32>
    %163 = vector.shape_cast %160 : vector<1x2x1xf32> to vector<1x1x2x1xf32>
    tpu.vector_store %arg9[%c0_93, %c1_94, %c0_95, %c2_96], %163 {strides = array<i32>} : memref<1x2x2x6xf32, #tpu.memory_space<vmem>>, vector<1x1x2x1xf32>,
    %164 = vector.extract_strided_slice %151 {offsets = [1, 0, 0], sizes = [1, 2, 1], strides = [1, 1, 1]} : vector<2x2x1xf32> to vector<1x2x1xf32>
    %c0_97 = arith.constant 0 : index
    %c1_98 = arith.constant 1 : index
    %c0_99 = arith.constant 0 : index
    %c3_100 = arith.constant 3 : index
    %165 = vector.load %arg9[%c0_97, %c1_98, %c0_99, %c3_100] : memref<1x2x2x6xf32, #tpu.memory_space<vmem>>, vector<1x1x2x1xf32>
    %166 = vector.shape_cast %165 : vector<1x1x2x1xf32> to vector<1x2x1xf32>
    %167 = vector.shape_cast %164 : vector<1x2x1xf32> to vector<1x1x2x1xf32>
    tpu.vector_store %arg9[%c0_97, %c1_98, %c0_99, %c3_100], %167 {strides = array<i32>} : memref<1x2x2x6xf32, #tpu.memory_space<vmem>>, vector<1x1x2x1xf32>,
    %168 = vector.extract_strided_slice %149 {offsets = [0, 0, 0], sizes = [1, 2, 1], strides = [1, 1, 1]} : vector<2x2x1xf32> to vector<1x2x1xf32>
    %169 = vector.shape_cast %168 : vector<1x2x1xf32> to vector<2x1xf32>
    %170 = vector.extract_strided_slice %87 {offsets = [1, 0], sizes = [1, 1], strides = [1, 1]} : vector<2x1xf32> to vector<1x1xf32>
    %171 = vector.broadcast %170 : vector<1x1xf32> to vector<2x1xf32>
    %172 = arith.mulf %169, %171 : vector<2x1xf32>
    %c0_101 = arith.constant 0 : index
    %c0_102 = arith.constant 0 : index
    %c0_103 = arith.constant 0 : index
    %c2_104 = arith.constant 2 : index
    %173 = vector.load %arg8[%c0_101, %c0_102, %c0_103, %c2_104] : memref<1x2x2x6xf32, #tpu.memory_space<vmem>>, vector<1x1x2x1xf32>
    %174 = vector.shape_cast %173 : vector<1x1x2x1xf32> to vector<2x1xf32>
    %175 = vector.shape_cast %172 : vector<2x1xf32> to vector<1x1x2x1xf32>
    tpu.vector_store %arg8[%c0_101, %c0_102, %c0_103, %c2_104], %175 {strides = array<i32>} : memref<1x2x2x6xf32, #tpu.memory_space<vmem>>, vector<1x1x2x1xf32>,
    %176 = vector.extract_strided_slice %151 {offsets = [0, 0, 0], sizes = [1, 2, 1], strides = [1, 1, 1]} : vector<2x2x1xf32> to vector<1x2x1xf32>
    %177 = vector.shape_cast %176 : vector<1x2x1xf32> to vector<2x1xf32>
    %178 = vector.extract_strided_slice %89 {offsets = [1, 0], sizes = [1, 1], strides = [1, 1]} : vector<2x1xf32> to vector<1x1xf32>
    %179 = vector.broadcast %178 : vector<1x1xf32> to vector<2x1xf32>
    %180 = arith.mulf %177, %179 : vector<2x1xf32>
    %c0_105 = arith.constant 0 : index
    %c0_106 = arith.constant 0 : index
    %c0_107 = arith.constant 0 : index
    %c3_108 = arith.constant 3 : index
    %181 = vector.load %arg8[%c0_105, %c0_106, %c0_107, %c3_108] : memref<1x2x2x6xf32, #tpu.memory_space<vmem>>, vector<1x1x2x1xf32>
    %182 = vector.shape_cast %181 : vector<1x1x2x1xf32> to vector<2x1xf32>
    %183 = vector.shape_cast %180 : vector<2x1xf32> to vector<1x1x2x1xf32>
    tpu.vector_store %arg8[%c0_105, %c0_106, %c0_107, %c3_108], %183 {strides = array<i32>} : memref<1x2x2x6xf32, #tpu.memory_space<vmem>>, vector<1x1x2x1xf32>,
    %184 = vector.extract_strided_slice %149 {offsets = [0, 0, 0], sizes = [1, 2, 1], strides = [1, 1, 1]} : vector<2x2x1xf32> to vector<1x2x1xf32>
    %185 = vector.shape_cast %184 : vector<1x2x1xf32> to vector<2x1xf32>
    %186 = vector.extract_strided_slice %91 {offsets = [1, 0], sizes = [1, 1], strides = [1, 1]} : vector<2x1xf32> to vector<1x1xf32>
    %187 = vector.broadcast %186 : vector<1x1xf32> to vector<2x1xf32>
    %188 = arith.mulf %185, %187 : vector<2x1xf32>
    %c0_109 = arith.constant 0 : index
    %c0_110 = arith.constant 0 : index
    %c0_111 = arith.constant 0 : index
    %c2_112 = arith.constant 2 : index
    %189 = vector.load %arg9[%c0_109, %c0_110, %c0_111, %c2_112] : memref<1x2x2x6xf32, #tpu.memory_space<vmem>>, vector<1x1x2x1xf32>
    %190 = vector.shape_cast %189 : vector<1x1x2x1xf32> to vector<2x1xf32>
    %191 = vector.shape_cast %188 : vector<2x1xf32> to vector<1x1x2x1xf32>
    tpu.vector_store %arg9[%c0_109, %c0_110, %c0_111, %c2_112], %191 {strides = array<i32>} : memref<1x2x2x6xf32, #tpu.memory_space<vmem>>, vector<1x1x2x1xf32>,
    %192 = vector.extract_strided_slice %151 {offsets = [0, 0, 0], sizes = [1, 2, 1], strides = [1, 1, 1]} : vector<2x2x1xf32> to vector<1x2x1xf32>
    %193 = vector.shape_cast %192 : vector<1x2x1xf32> to vector<2x1xf32>
    %194 = vector.extract_strided_slice %93 {offsets = [1, 0], sizes = [1, 1], strides = [1, 1]} : vector<2x1xf32> to vector<1x1xf32>
    %195 = vector.broadcast %194 : vector<1x1xf32> to vector<2x1xf32>
    %196 = arith.mulf %193, %195 : vector<2x1xf32>
    %c0_113 = arith.constant 0 : index
    %c0_114 = arith.constant 0 : index
    %c0_115 = arith.constant 0 : index
    %c3_116 = arith.constant 3 : index
    %197 = vector.load %arg9[%c0_113, %c0_114, %c0_115, %c3_116] : memref<1x2x2x6xf32, #tpu.memory_space<vmem>>, vector<1x1x2x1xf32>
    %198 = vector.shape_cast %197 : vector<1x1x2x1xf32> to vector<2x1xf32>
    %199 = vector.shape_cast %196 : vector<2x1xf32> to vector<1x1x2x1xf32>
    tpu.vector_store %arg9[%c0_113, %c0_114, %c0_115, %c3_116], %199 {strides = array<i32>} : memref<1x2x2x6xf32, #tpu.memory_space<vmem>>, vector<1x1x2x1xf32>,
    %cst_117 = arith.constant 1.000000e+00 : f32
    %200 = vector.broadcast %cst_117 : f32 to vector<2x2x1xf32>
    %c0_118 = arith.constant 0 : index
    %c0_119 = arith.constant 0 : index
    %c0_120 = arith.constant 0 : index
    %c4 = arith.constant 4 : index
    %201 = vector.load %arg8[%c0_118, %c0_119, %c0_120, %c4] : memref<1x2x2x6xf32, #tpu.memory_space<vmem>>, vector<1x2x2x1xf32>
    %202 = vector.shape_cast %201 : vector<1x2x2x1xf32> to vector<2x2x1xf32>
    %203 = vector.shape_cast %200 : vector<2x2x1xf32> to vector<1x2x2x1xf32>
    tpu.vector_store %arg8[%c0_118, %c0_119, %c0_120, %c4], %203 {strides = array<i32>} : memref<1x2x2x6xf32, #tpu.memory_space<vmem>>, vector<1x2x2x1xf32>,
    %c0_121 = arith.constant 0 : index
    %c0_122 = arith.constant 0 : index
    %c0_123 = arith.constant 0 : index
    %c4_124 = arith.constant 4 : index
    %204 = vector.load %arg9[%c0_121, %c0_122, %c0_123, %c4_124] : memref<1x2x2x6xf32, #tpu.memory_space<vmem>>, vector<1x2x2x1xf32>
    %205 = vector.shape_cast %204 : vector<1x2x2x1xf32> to vector<2x2x1xf32>
    %206 = vector.shape_cast %200 : vector<2x2x1xf32> to vector<1x2x2x1xf32>
    tpu.vector_store %arg9[%c0_121, %c0_122, %c0_123, %c4_124], %206 {strides = array<i32>} : memref<1x2x2x6xf32, #tpu.memory_space<vmem>>, vector<1x2x2x1xf32>,
    %207 = vector.shape_cast %94 : vector<1x1xf32> to vector<1x1xf32>
    %208 = vector.broadcast %207 : vector<1x1xf32> to vector<2x1xf32>
    %c0_125 = arith.constant 0 : index
    %c0_126 = arith.constant 0 : index
    %c0_127 = arith.constant 0 : index
    %c4_128 = arith.constant 4 : index
    %209 = vector.load %arg8[%c0_125, %c0_126, %c0_127, %c4_128] : memref<1x2x2x6xf32, #tpu.memory_space<vmem>>, vector<1x1x2x1xf32>
    %210 = vector.shape_cast %209 : vector<1x1x2x1xf32> to vector<2x1xf32>
    %211 = vector.shape_cast %208 : vector<2x1xf32> to vector<1x1x2x1xf32>
    tpu.vector_store %arg8[%c0_125, %c0_126, %c0_127, %c4_128], %211 {strides = array<i32>} : memref<1x2x2x6xf32, #tpu.memory_space<vmem>>, vector<1x1x2x1xf32>,
    %212 = vector.shape_cast %95 : vector<1x1xf32> to vector<1x1xf32>
    %213 = vector.broadcast %212 : vector<1x1xf32> to vector<2x1xf32>
    %c0_129 = arith.constant 0 : index
    %c0_130 = arith.constant 0 : index
    %c0_131 = arith.constant 0 : index
    %c4_132 = arith.constant 4 : index
    %214 = vector.load %arg9[%c0_129, %c0_130, %c0_131, %c4_132] : memref<1x2x2x6xf32, #tpu.memory_space<vmem>>, vector<1x1x2x1xf32>
    %215 = vector.shape_cast %214 : vector<1x1x2x1xf32> to vector<2x1xf32>
    %216 = vector.shape_cast %213 : vector<2x1xf32> to vector<1x1x2x1xf32>
    tpu.vector_store %arg9[%c0_129, %c0_130, %c0_131, %c4_132], %216 {strides = array<i32>} : memref<1x2x2x6xf32, #tpu.memory_space<vmem>>, vector<1x1x2x1xf32>,
    %c0_133 = arith.constant 0 : index
    %c0_134 = arith.constant 0 : index
    %c0_135 = arith.constant 0 : index
    %c5 = arith.constant 5 : index
    %217 = vector.load %arg8[%c0_133, %c0_134, %c0_135, %c5] : memref<1x2x2x6xf32, #tpu.memory_space<vmem>>, vector<1x2x2x1xf32>
    %218 = vector.shape_cast %217 : vector<1x2x2x1xf32> to vector<2x2x1xf32>
    %219 = vector.shape_cast %200 : vector<2x2x1xf32> to vector<1x2x2x1xf32>
    tpu.vector_store %arg8[%c0_133, %c0_134, %c0_135, %c5], %219 {strides = array<i32>} : memref<1x2x2x6xf32, #tpu.memory_space<vmem>>, vector<1x2x2x1xf32>,
    %c0_136 = arith.constant 0 : index
    %c0_137 = arith.constant 0 : index
    %c0_138 = arith.constant 0 : index
    %c5_139 = arith.constant 5 : index
    %220 = vector.load %arg9[%c0_136, %c0_137, %c0_138, %c5_139] : memref<1x2x2x6xf32, #tpu.memory_space<vmem>>, vector<1x2x2x1xf32>
    %221 = vector.shape_cast %220 : vector<1x2x2x1xf32> to vector<2x2x1xf32>
    %222 = vector.shape_cast %200 : vector<2x2x1xf32> to vector<1x2x2x1xf32>
    tpu.vector_store %arg9[%c0_136, %c0_137, %c0_138, %c5_139], %222 {strides = array<i32>} : memref<1x2x2x6xf32, #tpu.memory_space<vmem>>, vector<1x2x2x1xf32>,
    %cst_140 = arith.constant 0.000000e+00 : f32
    %223 = vector.broadcast %cst_140 : f32 to vector<2x1xf32>
    %c0_141 = arith.constant 0 : index
    %c0_142 = arith.constant 0 : index
    %c0_143 = arith.constant 0 : index
    %c5_144 = arith.constant 5 : index
    %224 = vector.load %arg8[%c0_141, %c0_142, %c0_143, %c5_144] : memref<1x2x2x6xf32, #tpu.memory_space<vmem>>, vector<1x1x2x1xf32>
    %225 = vector.shape_cast %224 : vector<1x1x2x1xf32> to vector<2x1xf32>
    %226 = vector.shape_cast %223 : vector<2x1xf32> to vector<1x1x2x1xf32>
    tpu.vector_store %arg8[%c0_141, %c0_142, %c0_143, %c5_144], %226 {strides = array<i32>} : memref<1x2x2x6xf32, #tpu.memory_space<vmem>>, vector<1x1x2x1xf32>,
    %227 = vector.shape_cast %75 : vector<1x1xf32> to vector<1x1xf32>
    %228 = vector.broadcast %227 : vector<1x1xf32> to vector<2x1xf32>
    %c0_145 = arith.constant 0 : index
    %c0_146 = arith.constant 0 : index
    %c0_147 = arith.constant 0 : index
    %c5_148 = arith.constant 5 : index
    %229 = vector.load %arg9[%c0_145, %c0_146, %c0_147, %c5_148] : memref<1x2x2x6xf32, #tpu.memory_space<vmem>>, vector<1x1x2x1xf32>
    %230 = vector.shape_cast %229 : vector<1x1x2x1xf32> to vector<2x1xf32>
    %231 = vector.shape_cast %228 : vector<2x1xf32> to vector<1x1x2x1xf32>
    tpu.vector_store %arg9[%c0_145, %c0_146, %c0_147, %c5_148], %231 {strides = array<i32>} : memref<1x2x2x6xf32, #tpu.memory_space<vmem>>, vector<1x1x2x1xf32>,
    %c0_149 = arith.constant 0 : index
    %c0_150 = arith.constant 0 : index
    %232 = vector.load %arg6[%c0_149, %c0_150] : memref<2x2xf32, #tpu.memory_space<vmem>>, vector<2x2xf32>
    %c0_151 = arith.constant 0 : index
    %c0_152 = arith.constant 0 : index
    %233 = vector.load %arg7[%c0_151, %c0_152] : memref<2x2xf32, #tpu.memory_space<vmem>>, vector<2x2xf32>
    %234 = math.absf %3 : vector<2x1xf32>
    %cst_153 = arith.constant 0.000000e+00 : f32
    %235 = vector.broadcast %cst_153 : f32 to vector<2x1xf32>
    %236 = arith.cmpf ogt, %234, %235 : vector<2x1xf32>
    %237 = arith.extui %236 : vector<2x1xi1> to vector<2x1xi32>
    %238 = arith.sitofp %237 : vector<2x1xi32> to vector<2x1xf32>
    %239 = math.absf %1 : vector<2x1xf32>
    %cst_154 = arith.constant 0.000000e+00 : f32
    %240 = vector.broadcast %cst_154 : f32 to vector<2x1xf32>
    %241 = arith.cmpf ogt, %239, %240 : vector<2x1xf32>
    %242 = arith.extui %241 : vector<2x1xi1> to vector<2x1xi32>
    %243 = arith.sitofp %242 : vector<2x1xi32> to vector<2x1xf32>
    %244 = vector.broadcast %238 : vector<2x1xf32> to vector<2x2xf32>
    %245 = arith.mulf %244, %233 : vector<2x2xf32>
    %cst_155 = arith.constant dense<0xFF800000> : vector<2xf32>
    %246 = vector.multi_reduction <maximumf>, %245, %cst_155 [0] : vector<2x2xf32> to vector<2xf32>
    %247 = vector.shape_cast %246 : vector<2xf32> to vector<1x2xf32>
    %248 = vector.broadcast %243 : vector<2x1xf32> to vector<2x2xf32>
    %249 = arith.mulf %248, %232 : vector<2x2xf32>
    %cst_156 = arith.constant dense<0xFF800000> : vector<2xf32>
    %250 = vector.multi_reduction <maximumf>, %249, %cst_156 [0] : vector<2x2xf32> to vector<2xf32>
    %251 = vector.shape_cast %250 : vector<2xf32> to vector<1x2xf32>
    %252 = arith.maximumf %247, %251 : vector<1x2xf32>
    %253 = vector.broadcast %243 : vector<2x1xf32> to vector<2x2xf32>
    %254 = arith.mulf %253, %233 : vector<2x2xf32>
    %cst_157 = arith.constant dense<0xFF800000> : vector<2xf32>
    %255 = vector.multi_reduction <maximumf>, %254, %cst_157 [0] : vector<2x2xf32> to vector<2xf32>
    %256 = vector.shape_cast %255 : vector<2xf32> to vector<1x2xf32>
    %257 = vector.broadcast %238 : vector<2x1xf32> to vector<2x2xf32>
    %258 = arith.mulf %257, %232 : vector<2x2xf32>
    %cst_158 = arith.constant dense<0xFF800000> : vector<2xf32>
    %259 = vector.multi_reduction <maximumf>, %258, %cst_158 [0] : vector<2x2xf32> to vector<2xf32>
    %260 = vector.shape_cast %259 : vector<2xf32> to vector<1x2xf32>
    %261 = arith.maximumf %256, %260 : vector<1x2xf32>
    %262 = vector.broadcast %85 : vector<1x1xf32> to vector<1x2xf32>
    %263 = arith.mulf %252, %262 : vector<1x2xf32>
    %264 = vector.shape_cast %263 : vector<1x2xf32> to vector<1x1x2xf32>
    %c0_159 = arith.constant 0 : index
    %c0_160 = arith.constant 0 : index
    %c0_161 = arith.constant 0 : index
    %265 = vector.load %arg10[%c0_159, %c0_160, %c0_161] : memref<1x1x2xf32, #tpu.memory_space<vmem>>, vector<1x1x2xf32>
    tpu.vector_store %arg10[%c0_159, %c0_160, %c0_161], %264 {strides = array<i32>} : memref<1x1x2xf32, #tpu.memory_space<vmem>>, vector<1x1x2xf32>,
    %cst_162 = arith.constant 0.000000e+00 : f32
    %cst_163 = arith.constant 1.000000e+00 : f32
    %266 = vector.broadcast %cst_162 : f32 to vector<1x1xf32>
    %267 = vector.broadcast %cst_163 : f32 to vector<1x1xf32>
    %268 = arith.select %55, %266, %267 : vector<1x1xi1>, vector<1x1xf32>
    %269 = vector.broadcast %268 : vector<1x1xf32> to vector<1x2xf32>
    %270 = arith.mulf %261, %269 : vector<1x2xf32>
    %271 = vector.shape_cast %270 : vector<1x2xf32> to vector<1x1x2xf32>
    %c0_164 = arith.constant 0 : index
    %c0_165 = arith.constant 0 : index
    %c0_166 = arith.constant 0 : index
    %272 = vector.load %arg11[%c0_164, %c0_165, %c0_166] : memref<1x1x2xf32, #tpu.memory_space<vmem>>, vector<1x1x2xf32>
    tpu.vector_store %arg11[%c0_164, %c0_165, %c0_166], %271 {strides = array<i32>} : memref<1x1x2xf32, #tpu.memory_space<vmem>>, vector<1x1x2xf32>,
    return
  }
  func.func @transform_0(%arg0: i32) -> (i32, i32, i32) {
    %c0_i32 = arith.constant 0 : i32
    %c0_i32_0 = arith.constant 0 : i32
    %c0_i32_1 = arith.constant 0 : i32
    return %arg0, %c0_i32, %c0_i32_0 : i32, i32, i32
  }
  func.func @transform_1(%arg0: i32) -> (i32, i32, i32) {
    %c0_i32 = arith.constant 0 : i32
    %c0_i32_0 = arith.constant 0 : i32
    %c0_i32_1 = arith.constant 0 : i32
    return %arg0, %c0_i32, %c0_i32_0 : i32, i32, i32
  }
  func.func @transform_2(%arg0: i32) -> (i32, i32, i32) {
    %c0_i32 = arith.constant 0 : i32
    %c0_i32_0 = arith.constant 0 : i32
    %c0_i32_1 = arith.constant 0 : i32
    return %arg0, %c0_i32, %c0_i32_0 : i32, i32, i32
  }
  func.func @transform_3(%arg0: i32) -> (i32, i32, i32, i32) {
    %c0_i32 = arith.constant 0 : i32
    %c0_i32_0 = arith.constant 0 : i32
    %c0_i32_1 = arith.constant 0 : i32
    %c0_i32_2 = arith.constant 0 : i32
    %c0_i32_3 = arith.constant 0 : i32
    return %c0_i32, %c0_i32_0, %c0_i32_1, %c0_i32_2 : i32, i32, i32, i32
  }
  func.func @transform_4(%arg0: i32) -> (i32, i32, i32, i32) {
    %c0_i32 = arith.constant 0 : i32
    %c0_i32_0 = arith.constant 0 : i32
    %c0_i32_1 = arith.constant 0 : i32
    %c0_i32_2 = arith.constant 0 : i32
    %c0_i32_3 = arith.constant 0 : i32
    return %c0_i32, %c0_i32_0, %c0_i32_1, %c0_i32_2 : i32, i32, i32, i32
  }
  func.func @transform_5(%arg0: i32) -> (i32, i32) {
    %c0_i32 = arith.constant 0 : i32
    %c0_i32_0 = arith.constant 0 : i32
    %c0_i32_1 = arith.constant 0 : i32
    return %c0_i32, %c0_i32_0 : i32, i32
  }
  func.func @transform_6(%arg0: i32) -> (i32, i32) {
    %c0_i32 = arith.constant 0 : i32
    %c0_i32_0 = arith.constant 0 : i32
    %c0_i32_1 = arith.constant 0 : i32
    return %c0_i32, %c0_i32_0 : i32, i32
  }
  func.func @transform_7(%arg0: i32) -> (i32, i32, i32, i32) {
    %c0_i32 = arith.constant 0 : i32
    %c0_i32_0 = arith.constant 0 : i32
    %c0_i32_1 = arith.constant 0 : i32
    %c0_i32_2 = arith.constant 0 : i32
    return %arg0, %c0_i32, %c0_i32_0, %c0_i32_1 : i32, i32, i32, i32
  }
  func.func @transform_8(%arg0: i32) -> (i32, i32, i32, i32) {
    %c0_i32 = arith.constant 0 : i32
    %c0_i32_0 = arith.constant 0 : i32
    %c0_i32_1 = arith.constant 0 : i32
    %c0_i32_2 = arith.constant 0 : i32
    return %arg0, %c0_i32, %c0_i32_0, %c0_i32_1 : i32, i32, i32, i32
  }
  func.func @transform_9(%arg0: i32) -> (i32, i32, i32) {
    %c0_i32 = arith.constant 0 : i32
    %c0_i32_0 = arith.constant 0 : i32
    %c0_i32_1 = arith.constant 0 : i32
    return %arg0, %c0_i32, %c0_i32_0 : i32, i32, i32
  }
  func.func @transform_10(%arg0: i32) -> (i32, i32, i32) {
    %c0_i32 = arith.constant 0 : i32
    %c0_i32_0 = arith.constant 0 : i32
    %c0_i32_1 = arith.constant 0 : i32
    return %arg0, %c0_i32, %c0_i32_0 : i32, i32, i32
  }
}

</mosaic_0001>

<llo_original>
// kernel: tpu_custom_call.1
$region0: #{tpu_custom_call.1}
  #allocation0 [shape = 'u32[]', space=smem, size = 0x4, offset = 0x4, fixed_abs, tag = 'smem constant byte address 0x4 - core index']
  #allocation1 [shape = 'u32[144,128]{1,0:T(1,128)}', space=vmem, size = 0x12000, scoped, tag = 'internal scratch']
  %s0 = inlined_call_operand.vmem [shape: f32[4,2,1], index: 0, kind: input, shape index: {}]
  %s1 = inlined_call_operand.vmem [shape: f32[4,2,1], index: 1, kind: input, shape index: {}]
  %s2 = inlined_call_operand.vmem [shape: f32[4,1,1], index: 2, kind: input, shape index: {}]
  %s3 = inlined_call_operand.vmem [shape: f32[2,2,2,1], index: 3, kind: input, shape index: {}]
  %s4 = inlined_call_operand.vmem [shape: f32[2,2,2,1], index: 4, kind: input, shape index: {}]
  %s5 = inlined_call_operand.vmem [shape: f32[2,2], index: 5, kind: input, shape index: {}]
  %s6 = inlined_call_operand.vmem [shape: f32[2,2], index: 6, kind: input, shape index: {}]
  %s7 = inlined_call_operand.hbm [shape: f32[4,2,2,6], index: 7, kind: output, shape index: {0}]
  %s8 = inlined_call_operand.hbm [shape: f32[4,2,2,6], index: 8, kind: output, shape index: {1}]
  %s9 = inlined_call_operand.vmem [shape: f32[4,1,2], index: 9, kind: output, shape index: {2}]
  %s10 = inlined_call_operand.vmem [shape: f32[4,1,2], index: 10, kind: output, shape index: {3}]
  %11 = xla_tuple %s7, %s8, %s9, %s10
  %s12 = sld [smem:[#allocation0]]
  $region85: #{tpu_custom_call.1} parent=0
    _
  %s14 = ssub.s32 1, %s12
  %s15 = scalar_select 0, %s14, %s12
  $region1: #{tpu_custom_call.1} parent=0
    #allocation2 [shape = 'u8[4096]{0}', space=vmem, size = 0x1000, scoped, tag = 'output window, operand 0']
    #allocation3 [shape = 's32[2]{0}', space=sflag, size = 0x8, scoped, tag = 'scoped memory for tpu_custom_call.1']
    #allocation4 [shape = 'u8[4096]{0}', space=vmem, size = 0x1000, scoped, tag = 'output window, operand 1']
    #allocation5 [shape = 's32[2]{0}', space=sflag, size = 0x8, scoped, tag = 'scoped memory for tpu_custom_call.1']
    %16 = vsyncpa [#allocation3], 0
    %s17 = scalar_lea.sflag [#allocation3], 1
    %18 = vsyncpa %s17, 0
    %19 = vsyncpa [#allocation5], 0
    %s20 = scalar_lea.sflag [#allocation5], 1
    %21 = vsyncpa %s20, 0
    loop: start=0, step=1, limit=6
    $region2: #{tpu_custom_call.1} parent=1 // loop_pre_header
      _
    $region3: #{tpu_custom_call.1} parent=1 // loop_header
      %s23 = sphi 0, %s27
      %p24 = scmp.ge.s32.totalorder %s23, 6
      %s33 = sphi 0, %s35
      %s36 = sphi 0, %s33
      %s37 = sphi 0, %s36
      %s53 = sphi 0, %s37
      %s59 = sphi 0, %s61
      %s62 = sphi 0, %s59
      %s63 = sphi 0, %s62
      %s79 = sphi 0, %s63
      %s85 = sphi 0, %s87
      %s88 = sphi 0, %s85
      %s89 = sphi 0, %s88
      %s105 = sphi 0, %s89
      %s109 = sphi 0, %s109
      %s111 = sphi 0, %s109
      %s112 = sphi 0, %s111
      %s126 = sphi 0, %s112
      %s130 = sphi 0, %s130
      %s132 = sphi 0, %s130
      %s133 = sphi 0, %s132
      %s147 = sphi 0, %s133
      %s151 = sphi 0, %s151
      %s153 = sphi 0, %s151
      %s154 = sphi 0, %s153
      %s168 = sphi 0, %s154
      %s172 = sphi 0, %s172
      %s174 = sphi 0, %s172
      %s175 = sphi 0, %s174
      %s189 = sphi 0, %s175
      %s195 = sphi 0, %s197
      %s198 = sphi 0, %s195
      %s199 = sphi 0, %s198
      %s215 = sphi 0, %s199
      %s221 = sphi 0, %s223
      %s224 = sphi 0, %s221
      %s225 = sphi 0, %s224
      %s241 = sphi 0, %s225
      %s247 = sphi 0, %s249
      %s250 = sphi 0, %s247
      %s251 = sphi 0, %s250
      %s267 = sphi 0, %s251
      %s273 = sphi 0, %s275
      %s276 = sphi 0, %s273
      %s277 = sphi 0, %s276
      %s293 = sphi 0, %s277
    $region4: #{tpu_custom_call.1} parent=1 // loop_header_branch
      %26 = sbr.rel (%p24) target = $region8
    $region5: #{tpu_custom_call.1} parent=1 // loop_body
      %s28 = ssub.s32 %s23, 1
      %s29 = ssub.s32 %s23, 2
      %s30 = sadd.s32 %s23, 1
      %s31 = ssub.s32 %s23, %s30
      %p32 = scmp.eq.s32.totalorder %s31, 0
      %s34 = sadd.s32 %s33, 1
      %s35 = scalar_select %p32, %s33, %s34
      %p38 = pneg %p32
      %p39 = scmp.eq.s32.totalorder %s23, 3
      %p40 = por %p38, %p39
      %p41 = scmp.ne.s32.totalorder %s33, %s36
      %p42 = scmp.eq.s32.totalorder %s23, 0
      %p43 = por %p41, %p42
      %p44 = scmp.ne.s32.totalorder %s33, %s36
      %p45 = scmp.eq.s32.totalorder %s28, 3
      %p46 = por %p44, %p45
      %p47 = scmp.ne.s32.totalorder %s36, %s37
      %p48 = scmp.eq.s32.totalorder %s28, 0
      %p49 = por %p47, %p48
      %p50 = scmp.ne.s32.totalorder %s36, %s37
      %p51 = scmp.eq.s32.totalorder %s29, 3
      %p52 = por %p50, %p51
      %p54 = scmp.ne.s32.totalorder %s37, %s53
      %p55 = scmp.eq.s32.totalorder %s29, 0
      %p56 = por %p54, %p55
      %s57 = ssub.s32 %s23, %s30
      %p58 = scmp.eq.s32.totalorder %s57, 0
      %s60 = sadd.s32 %s59, 1
      %s61 = scalar_select %p58, %s59, %s60
      %p64 = pneg %p58
      %p65 = scmp.eq.s32.totalorder %s23, 3
      %p66 = por %p64, %p65
      %p67 = scmp.ne.s32.totalorder %s59, %s62
      %p68 = scmp.eq.s32.totalorder %s23, 0
      %p69 = por %p67, %p68
      %p70 = scmp.ne.s32.totalorder %s59, %s62
      %p71 = scmp.eq.s32.totalorder %s28, 3
      %p72 = por %p70, %p71
      %p73 = scmp.ne.s32.totalorder %s62, %s63
      %p74 = scmp.eq.s32.totalorder %s28, 0
      %p75 = por %p73, %p74
      %p76 = scmp.ne.s32.totalorder %s62, %s63
      %p77 = scmp.eq.s32.totalorder %s29, 3
      %p78 = por %p76, %p77
      %p80 = scmp.ne.s32.totalorder %s63, %s79
      %p81 = scmp.eq.s32.totalorder %s29, 0
      %p82 = por %p80, %p81
      %s83 = ssub.s32 %s23, %s30
      %p84 = scmp.eq.s32.totalorder %s83, 0
      %s86 = sadd.s32 %s85, 1
      %s87 = scalar_select %p84, %s85, %s86
      %p90 = pneg %p84
      %p91 = scmp.eq.s32.totalorder %s23, 3
      %p92 = por %p90, %p91
      %p93 = scmp.ne.s32.totalorder %s85, %s88
      %p94 = scmp.eq.s32.totalorder %s23, 0
      %p95 = por %p93, %p94
      %p96 = scmp.ne.s32.totalorder %s85, %s88
      %p97 = scmp.eq.s32.totalorder %s28, 3
      %p98 = por %p96, %p97
      %p99 = scmp.ne.s32.totalorder %s88, %s89
      %p100 = scmp.eq.s32.totalorder %s28, 0
      %p101 = por %p99, %p100
      %p102 = scmp.ne.s32.totalorder %s88, %s89
      %p103 = scmp.eq.s32.totalorder %s29, 3
      %p104 = por %p102, %p103
      %p106 = scmp.ne.s32.totalorder %s89, %s105
      %p107 = scmp.eq.s32.totalorder %s29, 0
      %p108 = por %p106, %p107
      %s110 = sadd.s32 %s109, 1
      %p113 = scmp.eq.s32.totalorder %s23, 3
      %p114 = scmp.ne.s32.totalorder %s109, %s111
      %p115 = scmp.eq.s32.totalorder %s23, 0
      %p116 = por %p114, %p115
      %p117 = scmp.ne.s32.totalorder %s109, %s111
      %p118 = scmp.eq.s32.totalorder %s28, 3
      %p119 = por %p117, %p118
      %p120 = scmp.ne.s32.totalorder %s111, %s112
      %p121 = scmp.eq.s32.totalorder %s28, 0
      %p122 = por %p120, %p121
      %p123 = scmp.ne.s32.totalorder %s111, %s112
      %p124 = scmp.eq.s32.totalorder %s29, 3
      %p125 = por %p123, %p124
      %p127 = scmp.ne.s32.totalorder %s112, %s126
      %p128 = scmp.eq.s32.totalorder %s29, 0
      %p129 = por %p127, %p128
      %s131 = sadd.s32 %s130, 1
      %p134 = scmp.eq.s32.totalorder %s23, 3
      %p135 = scmp.ne.s32.totalorder %s130, %s132
      %p136 = scmp.eq.s32.totalorder %s23, 0
      %p137 = por %p135, %p136
      %p138 = scmp.ne.s32.totalorder %s130, %s132
      %p139 = scmp.eq.s32.totalorder %s28, 3
      %p140 = por %p138, %p139
      %p141 = scmp.ne.s32.totalorder %s132, %s133
      %p142 = scmp.eq.s32.totalorder %s28, 0
      %p143 = por %p141, %p142
      %p144 = scmp.ne.s32.totalorder %s132, %s133
      %p145 = scmp.eq.s32.totalorder %s29, 3
      %p146 = por %p144, %p145
      %p148 = scmp.ne.s32.totalorder %s133, %s147
      %p149 = scmp.eq.s32.totalorder %s29, 0
      %p150 = por %p148, %p149
      %s152 = sadd.s32 %s151, 1
      %p155 = scmp.eq.s32.totalorder %s23, 3
      %p156 = scmp.ne.s32.totalorder %s151, %s153
      %p157 = scmp.eq.s32.totalorder %s23, 0
      %p158 = por %p156, %p157
      %p159 = scmp.ne.s32.totalorder %s151, %s153
      %p160 = scmp.eq.s32.totalorder %s28, 3
      %p161 = por %p159, %p160
      %p162 = scmp.ne.s32.totalorder %s153, %s154
      %p163 = scmp.eq.s32.totalorder %s28, 0
      %p164 = por %p162, %p163
      %p165 = scmp.ne.s32.totalorder %s153, %s154
      %p166 = scmp.eq.s32.totalorder %s29, 3
      %p167 = por %p165, %p166
      %p169 = scmp.ne.s32.totalorder %s154, %s168
      %p170 = scmp.eq.s32.totalorder %s29, 0
      %p171 = por %p169, %p170
      %s173 = sadd.s32 %s172, 1
      %p176 = scmp.eq.s32.totalorder %s23, 3
      %p177 = scmp.ne.s32.totalorder %s172, %s174
      %p178 = scmp.eq.s32.totalorder %s23, 0
      %p179 = por %p177, %p178
      %p180 = scmp.ne.s32.totalorder %s172, %s174
      %p181 = scmp.eq.s32.totalorder %s28, 3
      %p182 = por %p180, %p181
      %p183 = scmp.ne.s32.totalorder %s174, %s175
      %p184 = scmp.eq.s32.totalorder %s28, 0
      %p185 = por %p183, %p184
      %p186 = scmp.ne.s32.totalorder %s174, %s175
      %p187 = scmp.eq.s32.totalorder %s29, 3
      %p188 = por %p186, %p187
      %p190 = scmp.ne.s32.totalorder %s175, %s189
      %p191 = scmp.eq.s32.totalorder %s29, 0
      %p192 = por %p190, %p191
      %s193 = ssub.s32 %s23, %s30
      %p194 = scmp.eq.s32.totalorder %s193, 0
      %s196 = sadd.s32 %s195, 1
      %s197 = scalar_select %p194, %s195, %s196
      %p200 = pneg %p194
      %p201 = scmp.eq.s32.totalorder %s23, 3
      %p202 = por %p200, %p201
      %p203 = scmp.ne.s32.totalorder %s195, %s198
      %p204 = scmp.eq.s32.totalorder %s23, 0
      %p205 = por %p203, %p204
      %p206 = scmp.ne.s32.totalorder %s195, %s198
      %p207 = scmp.eq.s32.totalorder %s28, 3
      %p208 = por %p206, %p207
      %p209 = scmp.ne.s32.totalorder %s198, %s199
      %p210 = scmp.eq.s32.totalorder %s28, 0
      %p211 = por %p209, %p210
      %p212 = scmp.ne.s32.totalorder %s198, %s199
      %p213 = scmp.eq.s32.totalorder %s29, 3
      %p214 = por %p212, %p213
      %p216 = scmp.ne.s32.totalorder %s199, %s215
      %p217 = scmp.eq.s32.totalorder %s29, 0
      %p218 = por %p216, %p217
      %s219 = ssub.s32 %s23, %s30
      %p220 = scmp.eq.s32.totalorder %s219, 0
      %s222 = sadd.s32 %s221, 1
      %s223 = scalar_select %p220, %s221, %s222
      %p226 = pneg %p220
      %p227 = scmp.eq.s32.totalorder %s23, 3
      %p228 = por %p226, %p227
      %p229 = scmp.ne.s32.totalorder %s221, %s224
      %p230 = scmp.eq.s32.totalorder %s23, 0
      %p231 = por %p229, %p230
      %p232 = scmp.ne.s32.totalorder %s221, %s224
      %p233 = scmp.eq.s32.totalorder %s28, 3
      %p234 = por %p232, %p233
      %p235 = scmp.ne.s32.totalorder %s224, %s225
      %p236 = scmp.eq.s32.totalorder %s28, 0
      %p237 = por %p235, %p236
      %p238 = scmp.ne.s32.totalorder %s224, %s225
      %p239 = scmp.eq.s32.totalorder %s29, 3
      %p240 = por %p238, %p239
      %p242 = scmp.ne.s32.totalorder %s225, %s241
      %p243 = scmp.eq.s32.totalorder %s29, 0
      %p244 = por %p242, %p243
      %s245 = ssub.s32 %s23, %s30
      %p246 = scmp.eq.s32.totalorder %s245, 0
      %s248 = sadd.s32 %s247, 1
      %s249 = scalar_select %p246, %s247, %s248
      %p252 = pneg %p246
      %p253 = scmp.eq.s32.totalorder %s23, 3
      %p254 = por %p252, %p253
      %p255 = scmp.ne.s32.totalorder %s247, %s250
      %p256 = scmp.eq.s32.totalorder %s23, 0
      %p257 = por %p255, %p256
      %p258 = scmp.ne.s32.totalorder %s247, %s250
      %p259 = scmp.eq.s32.totalorder %s28, 3
      %p260 = por %p258, %p259
      %p261 = scmp.ne.s32.totalorder %s250, %s251
      %p262 = scmp.eq.s32.totalorder %s28, 0
      %p263 = por %p261, %p262
      %p264 = scmp.ne.s32.totalorder %s250, %s251
      %p265 = scmp.eq.s32.totalorder %s29, 3
      %p266 = por %p264, %p265
      %p268 = scmp.ne.s32.totalorder %s251, %s267
      %p269 = scmp.eq.s32.totalorder %s29, 0
      %p270 = por %p268, %p269
      %s271 = ssub.s32 %s23, %s30
      %p272 = scmp.eq.s32.totalorder %s271, 0
      %s274 = sadd.s32 %s273, 1
      %s275 = scalar_select %p272, %s273, %s274
      %p278 = pneg %p272
      %p279 = scmp.eq.s32.totalorder %s23, 3
      %p280 = por %p278, %p279
      %p281 = scmp.ne.s32.totalorder %s273, %s276
      %p282 = scmp.eq.s32.totalorder %s23, 0
      %p283 = por %p281, %p282
      %p284 = scmp.ne.s32.totalorder %s273, %s276
      %p285 = scmp.eq.s32.totalorder %s28, 3
      %p286 = por %p284, %p285
      %p287 = scmp.ne.s32.totalorder %s276, %s277
      %p288 = scmp.eq.s32.totalorder %s28, 0
      %p289 = por %p287, %p288
      %p290 = scmp.ne.s32.totalorder %s276, %s277
      %p291 = scmp.eq.s32.totalorder %s29, 3
      %p292 = por %p290, %p291
      %p294 = scmp.ne.s32.totalorder %s277, %s293
      %p295 = scmp.eq.s32.totalorder %s29, 0
      %p296 = por %p294, %p295
      %p297 = scmp.le.s32.totalorder 1, %s23
      %p298 = scmp.lt.s32.totalorder %s23, 5
      %p299 = pnand %p297, %p298
      %p300 = pneg %p299
      // Predicated region
      $region9: #{tpu_custom_call.1} parent=5 // pred_check
        _
      $region10: #{tpu_custom_call.1} parent=5 // pred_check_branch
        %302 = sbr.rel (%p299) target = $region12
      $region11: #{tpu_custom_call.1} parent=5 // pred_region
        %s303 = ssub.s32 %s23, 1
        // Predicated region
        $region13: #{tpu_custom_call.1} parent=11 // pred_check
          %p304 = pneg %p122
        $region14: #{tpu_custom_call.1} parent=11 // pred_check_branch
          %306 = sbr.rel (%p304) target = $region16
        $region15: #{tpu_custom_call.1} parent=11 // pred_region
          _
        $region16: #{tpu_custom_call.1} parent=11 // pred_fallthru
          _
        // Predicated region
        $region17: #{tpu_custom_call.1} parent=11 // pred_check
          %p307 = pneg %p143
        $region18: #{tpu_custom_call.1} parent=11 // pred_check_branch
          %309 = sbr.rel (%p307) target = $region20
        $region19: #{tpu_custom_call.1} parent=11 // pred_region
          _
        $region20: #{tpu_custom_call.1} parent=11 // pred_fallthru
          _
        // Predicated region
        $region21: #{tpu_custom_call.1} parent=11 // pred_check
          %p310 = pneg %p164
        $region22: #{tpu_custom_call.1} parent=11 // pred_check_branch
          %312 = sbr.rel (%p310) target = $region24
        $region23: #{tpu_custom_call.1} parent=11 // pred_region
          _
        $region24: #{tpu_custom_call.1} parent=11 // pred_fallthru
          _
        // Predicated region
        $region25: #{tpu_custom_call.1} parent=11 // pred_check
          %p313 = pneg %p185
        $region26: #{tpu_custom_call.1} parent=11 // pred_check_branch
          %315 = sbr.rel (%p313) target = $region28
        $region27: #{tpu_custom_call.1} parent=11 // pred_region
          _
        $region28: #{tpu_custom_call.1} parent=11 // pred_fallthru
          _
      $region12: #{tpu_custom_call.1} parent=5 // pred_fallthru
        _
      %p316 = scmp.lt.s32.totalorder %s23, 4
      // Predicated region
      $region29: #{tpu_custom_call.1} parent=5 // pred_check
        %p317 = pneg %p316
      $region30: #{tpu_custom_call.1} parent=5 // pred_check_branch
        %319 = sbr.rel (%p317) target = $region32
      $region31: #{tpu_custom_call.1} parent=5 // pred_region
        // Predicated region
        $region33: #{tpu_custom_call.1} parent=31 // pred_check
          %p320 = pneg %p43
        $region34: #{tpu_custom_call.1} parent=31 // pred_check_branch
          %322 = sbr.rel (%p320) target = $region36
        $region35: #{tpu_custom_call.1} parent=31 // pred_region
          %p323 = scmp.lt.s32.totalorder %s23, 3
          %s324 = scalar_select %p323, %s23, 3
          %s325 = smul.addr %s324, 2
          %s326 = scalar_lea.vmem %s0, %s325
        $region36: #{tpu_custom_call.1} parent=31 // pred_fallthru
          _
        // Predicated region
        $region37: #{tpu_custom_call.1} parent=31 // pred_check
          %p327 = pneg %p69
        $region38: #{tpu_custom_call.1} parent=31 // pred_check_branch
          %329 = sbr.rel (%p327) target = $region40
        $region39: #{tpu_custom_call.1} parent=31 // pred_region
          %p330 = scmp.lt.s32.totalorder %s23, 3
          %s331 = scalar_select %p330, %s23, 3
          %s332 = smul.addr %s331, 2
          %s333 = scalar_lea.vmem %s1, %s332
        $region40: #{tpu_custom_call.1} parent=31 // pred_fallthru
          _
        // Predicated region
        $region41: #{tpu_custom_call.1} parent=31 // pred_check
          %p334 = pneg %p95
        $region42: #{tpu_custom_call.1} parent=31 // pred_check_branch
          %336 = sbr.rel (%p334) target = $region44
        $region43: #{tpu_custom_call.1} parent=31 // pred_region
          %p337 = scmp.lt.s32.totalorder %s23, 3
          %s338 = scalar_select %p337, %s23, 3
          %s339 = scalar_lea.vmem %s2, %s338
        $region44: #{tpu_custom_call.1} parent=31 // pred_fallthru
          _
      $region32: #{tpu_custom_call.1} parent=5 // pred_fallthru
        _
      %p340 = scmp.le.s32.totalorder 1, %s23
      %p341 = scmp.lt.s32.totalorder %s23, 5
      %p342 = pnand %p340, %p341
      %p343 = pneg %p342
      // Predicated region
      $region45: #{tpu_custom_call.1} parent=5 // pred_check
        _
      $region46: #{tpu_custom_call.1} parent=5 // pred_check_branch
        %345 = sbr.rel (%p342) target = $region48
      $region47: #{tpu_custom_call.1} parent=5 // pred_region
        %s346 = ssub.s32 %s23, 1
        %p347 = scmp.lt.s32.totalorder %s28, 3
        %s348 = scalar_select %p347, %s28, 3
        %s349 = smul.addr %s348, 2
        %s350 = scalar_lea.vmem %s0, %s349
        %p351 = pneg %p49
        %p352 = pneg %p46
        %p353 = scmp.lt.s32.totalorder %s28, 3
        %s354 = scalar_select %p353, %s28, 3
        %s355 = smul.addr %s354, 2
        %s356 = scalar_lea.vmem %s1, %s355
        %p357 = pneg %p75
        %p358 = pneg %p72
        %p359 = scmp.lt.s32.totalorder %s28, 3
        %s360 = scalar_select %p359, %s28, 3
        %s361 = scalar_lea.vmem %s2, %s360
        %p362 = pneg %p101
        %p363 = pneg %p98
        %p364 = pneg %p122
        %p365 = pneg %p119
        %p366 = pneg %p143
        %p367 = pneg %p140
        %p368 = pneg %p164
        %p369 = pneg %p161
        %p370 = pneg %p185
        %p371 = pneg %p182
        %p372 = pneg %p211
        %p373 = pneg %p208
        %s374 = sand.u32 %s198, 1
        %s375 = scalar_lea.sflag [#allocation3], %s374
        %s376 = sand.u32 %s198, 1
        %s377 = smul.addr %s376, 4
        %s378 = scalar_lea.vmem [#allocation2], %s377
        %p379 = pneg %p237
        %p380 = pneg %p234
        %s381 = sand.u32 %s224, 1
        %s382 = scalar_lea.sflag [#allocation5], %s381
        %s383 = sand.u32 %s224, 1
        %s384 = smul.addr %s383, 4
        %s385 = scalar_lea.vmem [#allocation4], %s384
        %p386 = pneg %p263
        %p387 = pneg %p260
        %p388 = scmp.lt.s32.totalorder %s28, 3
        %s389 = scalar_select %p388, %s28, 3
        %s390 = scalar_lea.vmem %s9, %s389
        %p391 = pneg %p289
        %p392 = pneg %p286
        %p393 = scmp.lt.s32.totalorder %s28, 3
        %s394 = scalar_select %p393, %s28, 3
        %s395 = scalar_lea.vmem %s10, %s394
        %p396 = scmp.lt.s32.totalorder %s28, 3
        %s397 = scalar_select %p396, %s28, 3
        %s398 = smul.addr %s397, 2
        %s399 = scalar_lea.vmem %s0, %s398
        %p400 = scmp.lt.s32.totalorder %s28, 3
        %s401 = scalar_select %p400, %s28, 3
        %s402 = smul.addr %s401, 2
        %s403 = scalar_lea.vmem %s1, %s402
        %p404 = scmp.lt.s32.totalorder %s28, 3
        %s405 = scalar_select %p404, %s28, 3
        %s406 = scalar_lea.vmem %s2, %s405
        %p407 = scmp.lt.s32.totalorder %s28, 3
        %s408 = scalar_select %p407, %s28, 3
        %s409 = scalar_lea.vmem %s9, %s408
        %p410 = scmp.lt.s32.totalorder %s28, 3
        %s411 = scalar_select %p410, %s28, 3
        %s412 = scalar_lea.vmem %s10, %s411
        %v413 = vld [vmem:[%s399] sm:$0x3]
        %v414 = vld [vmem:[%s403] sm:$0x3]
        %v415 = vld [vmem:[%s406] sm:$0x1]
        %v416 = vld [vmem:[%s4] sm:$0x3]
        %v417 = vld [vmem:[%s4 + $0x2] sm:$0x3]
        %v418 = vld [vmem:[%s4 + $0x4] sm:$0x3]
        %v419 = vld [vmem:[%s4 + $0x6] sm:$0x3]
        %v420 = vld [vmem:[%s3] sm:$0x3]
        %v421 = vld [vmem:[%s3 + $0x2] sm:$0x3]
        %v422 = vld [vmem:[%s3 + $0x4] sm:$0x3]
        %v423 = vld [vmem:[%s3 + $0x6] sm:$0x3]
        %vm424 = vcmask 1024
        %v425 = vsel %vm424, %v416, inf
        %v426 = vrot.slane %v425, 4
        %v427 = vmin.f32 %v425, %v426
        %v428 = vrot.slane %v427, 2
        %v429 = vmin.f32 %v427, %v428
        %v430 = vrot.slane %v429, 1
        %v431 = vmin.f32 %v429, %v430
        %v432 = vsel %vm424, %v418, inf
        %v433 = vrot.slane %v432, 4
        %v434 = vmin.f32 %v432, %v433
        %v435 = vrot.slane %v434, 2
        %v436 = vmin.f32 %v434, %v435
        %v437 = vrot.slane %v436, 1
        %v438 = vmin.f32 %v436, %v437
        %v439 = vsel %vm424, %v416, -inf
        %v440 = vrot.slane %v439, 4
        %v441 = vmax.f32 %v439, %v440
        %v442 = vrot.slane %v441, 2
        %v443 = vmax.f32 %v441, %v442
        %v444 = vrot.slane %v443, 1
        %v445 = vmax.f32 %v443, %v444
        %v446 = vsel %vm424, %v418, -inf
        %v447 = vrot.slane %v446, 4
        %v448 = vmax.f32 %v446, %v447
        %v449 = vrot.slane %v448, 2
        %v450 = vmax.f32 %v448, %v449
        %v451 = vrot.slane %v450, 1
        %v452 = vmax.f32 %v450, %v451
        %v453 = vsel %vm424, %v417, inf
        %v454 = vrot.slane %v453, 4
        %v455 = vmin.f32 %v453, %v454
        %v456 = vrot.slane %v455, 2
        %v457 = vmin.f32 %v455, %v456
        %v458 = vrot.slane %v457, 1
        %v459 = vmin.f32 %v457, %v458
        %v460 = vsel %vm424, %v419, inf
        %v461 = vrot.slane %v460, 4
        %v462 = vmin.f32 %v460, %v461
        %v463 = vrot.slane %v462, 2
        %v464 = vmin.f32 %v462, %v463
        %v465 = vrot.slane %v464, 1
        %v466 = vmin.f32 %v464, %v465
        %v467 = vsel %vm424, %v417, -inf
        %v468 = vrot.slane %v467, 4
        %v469 = vmax.f32 %v467, %v468
        %v470 = vrot.slane %v469, 2
        %v471 = vmax.f32 %v469, %v470
        %v472 = vrot.slane %v471, 1
        %v473 = vmax.f32 %v471, %v472
        %v474 = vsel %vm424, %v419, -inf
        %v475 = vrot.slane %v474, 4
        %v476 = vmax.f32 %v474, %v475
        %v477 = vrot.slane %v476, 2
        %v478 = vmax.f32 %v476, %v477
        %v479 = vrot.slane %v478, 1
        %v480 = vmax.f32 %v478, %v479
        %v481 = vmul.f32 %v431, %v459
        %v482 = vmul.f32 %v438, %v466
        %v483 = vmul.f32 %v431, %v473
        %v484 = vmul.f32 %v438, %v480
        %v485 = vmul.f32 %v445, %v459
        %v486 = vmul.f32 %v452, %v466
        %v487 = vmul.f32 %v445, %v473
        %v488 = vmul.f32 %v452, %v480
        %v489 = vmax.f32 %v481, %v483
        %v490 = vmax.f32 %v482, %v484
        %v491 = vmax.f32 %v485, %v487
        %v492 = vmax.f32 %v486, %v488
        %v493 = vmax.f32 %v489, %v491
        %v494 = vmax.f32 %v490, %v492
        %v495 = vadd.f32 %v493, 0.0
        %v496 = vadd.f32 %v494, 0.0
        %v497 = vsel %vm424, %v420, inf
        %v498 = vrot.slane %v497, 4
        %v499 = vmin.f32 %v497, %v498
        %v500 = vrot.slane %v499, 2
        %v501 = vmin.f32 %v499, %v500
        %v502 = vrot.slane %v501, 1
        %v503 = vmin.f32 %v501, %v502
        %v504 = vsel %vm424, %v422, inf
        %v505 = vrot.slane %v504, 4
        %v506 = vmin.f32 %v504, %v505
        %v507 = vrot.slane %v506, 2
        %v508 = vmin.f32 %v506, %v507
        %v509 = vrot.slane %v508, 1
        %v510 = vmin.f32 %v508, %v509
        %v511 = vsel %vm424, %v420, -inf
        %v512 = vrot.slane %v511, 4
        %v513 = vmax.f32 %v511, %v512
        %v514 = vrot.slane %v513, 2
        %v515 = vmax.f32 %v513, %v514
        %v516 = vrot.slane %v515, 1
        %v517 = vmax.f32 %v515, %v516
        %v518 = vsel %vm424, %v422, -inf
        %v519 = vrot.slane %v518, 4
        %v520 = vmax.f32 %v518, %v519
        %v521 = vrot.slane %v520, 2
        %v522 = vmax.f32 %v520, %v521
        %v523 = vrot.slane %v522, 1
        %v524 = vmax.f32 %v522, %v523
        %v525 = vsel %vm424, %v421, inf
        %v526 = vrot.slane %v525, 4
        %v527 = vmin.f32 %v525, %v526
        %v528 = vrot.slane %v527, 2
        %v529 = vmin.f32 %v527, %v528
        %v530 = vrot.slane %v529, 1
        %v531 = vmin.f32 %v529, %v530
        %v532 = vsel %vm424, %v423, inf
        %v533 = vrot.slane %v532, 4
        %v534 = vmin.f32 %v532, %v533
        %v535 = vrot.slane %v534, 2
        %v536 = vmin.f32 %v534, %v535
        %v537 = vrot.slane %v536, 1
        %v538 = vmin.f32 %v536, %v537
        %v539 = vsel %vm424, %v421, -inf
        %v540 = vrot.slane %v539, 4
        %v541 = vmax.f32 %v539, %v540
        %v542 = vrot.slane %v541, 2
        %v543 = vmax.f32 %v541, %v542
        %v544 = vrot.slane %v543, 1
        %v545 = vmax.f32 %v543, %v544
        %v546 = vsel %vm424, %v423, -inf
        %v547 = vrot.slane %v546, 4
        %v548 = vmax.f32 %v546, %v547
        %v549 = vrot.slane %v548, 2
        %v550 = vmax.f32 %v548, %v549
        %v551 = vrot.slane %v550, 1
        %v552 = vmax.f32 %v550, %v551
        %v553 = vmul.f32 %v503, %v531
        %v554 = vmul.f32 %v510, %v538
        %v555 = vmul.f32 %v503, %v545
        %v556 = vmul.f32 %v510, %v552
        %v557 = vmul.f32 %v517, %v531
        %v558 = vmul.f32 %v524, %v538
        %v559 = vmul.f32 %v517, %v545
        %v560 = vmul.f32 %v524, %v552
        %v561 = vmin.f32 %v553, %v555
        %v562 = vmin.f32 %v554, %v556
        %v563 = vmin.f32 %v557, %v559
        %v564 = vmin.f32 %v558, %v560
        %v565 = vmin.f32 %v561, %v563
        %v566 = vmin.f32 %v562, %v564
        %v567 = vadd.f32 %v565, 0.0
        %v568 = vadd.f32 %v566, 0.0
        %vm571 = vcmask 1041409
        %v572 = vsel %vm571, %v496, %v495
        %v574 = vmul.f32 %v414, %v572
        %v577 = vsel %vm571, %v568, %v567
        %v579 = vmul.f32 %v413, %v577
        %v580 = vadd.f32 %v574, %v579
        %v581 = vsel %vm424, %v580, 0.0
        %v582 = vrot.slane %v581, 4
        %v583 = vadd.f32 %v581, %v582
        %v584 = vrot.slane %v583, 2
        %v585 = vadd.f32 %v583, %v584
        %v586 = vrot.slane %v585, 1
        %v587 = vadd.f32 %v585, %v586
        %v588 = vadd.f32 %v587, %v415
        %v589 = vmul.f32 %v413, %v572
        %v590 = vmul.f32 %v414, %v577
        %v591 = vadd.f32 %v589, %v590
        %v592 = vsel %vm424, %v591, 0.0
        %v593 = vrot.slane %v592, 4
        %v594 = vadd.f32 %v592, %v593
        %v595 = vrot.slane %v594, 2
        %v596 = vadd.f32 %v594, %v595
        %v597 = vrot.slane %v596, 1
        %v598 = vadd.f32 %v596, %v597
        %v599 = vadd.f32 %v598, %v415
        %vm600 = vcmp.le.f32.partialorder %v599, 0.0
        %vm601 = vcmp.ge.f32.partialorder %v588, 0.0
        %v602 = vsub.f32 %v599, %v588
        %v603 = vand.u32 2147483647, %v602
        %vm604 = vcmp.lt.f32.partialorder %v603, 1e-12
        %v605 = vsel %vm604, 1.0, %v602
        %v606 = vrcp.pop %v605
        %v607 = vmul.f32 %v599, %v606
        %v608 = vsel %vm601, 1.0, %v607
        %v609 = vsel %vm600, 0.0, %v608
        %vm610 = vmor %vm600, %vm601
        %v611 = vsub.f32 0.0, %v588
        %v612 = vmul.f32 %v611, %v599
        %v613 = vmul.f32 %v612, %v606
        %v614 = vsel %vm610, 0.0, %v613
        %vm615 = vcmp.ge.f32.partialorder %v599, %v611
        %v616 = vsel %vm615, 1.0, 0.0
        %v617 = vsel %vm601, 1.0, %v616
        %v618 = vsel %vm600, 0.0, %v617
        %v619 = vlaneseq
        %v620 = vshrl.u32 %v619, 7
        %v621 = vsub.s32 0, %v620
        %v622 = vrot.slane %v618, %v621
        %v623 = vmul.f32 %v414, %v622
        %v624 = vmul.f32 %v413, %v622
        %v625 = vlaneseq
        %v626 = vshrl.u32 %v625, 7
        %v627 = vsub.s32 0, %v626
        %v628 = vrot.slane %v609, %v627
        %v629 = vmul.f32 %v413, %v628
        %v630 = vmul.f32 %v414, %v628
        %v631 = vmul.f32 %v618, %v415
        %v632 = vmul.f32 %v609, %v415
        %s633 = scalar_lea.vmem %s378, 2 [#allocation2]
        %634 = vst.msk [vmem:[%s633] sm:$0x3] %vm424, %v417
        %636 = vrot.lane.b32.xlu0 %v421, 1
        %v637 = vpop.permute.xlu0 %636
        %vm639 = vcmask 9224
        %640 = vst.msk [vmem:[%s633] sm:$0x3] %vm639, %v637
        %s641 = scalar_lea.vmem %s385, 2 [#allocation4]
        %642 = vst.msk [vmem:[%s641] sm:$0x3] %vm424, %v417
        %643 = vst.msk [vmem:[%s641] sm:$0x3] %vm639, %v637
        %v644 = vlaneseq
        %v645 = vshrl.u32 %v644, 7
        %v646 = vsub.s32 0, %v645
        %v647 = vrot.slane %v623, %v646
        %v648 = vmul.f32 %v416, %v647
        %649 = vst.msk [vmem:[%s378] sm:$0x3] %vm424, %v648
        %v650 = vlaneseq
        %v651 = vshrl.u32 %v650, 7
        %v652 = vsub.s32 0, %v651
        %v653 = vrot.slane %v624, %v652
        %v654 = vmul.f32 %v420, %v653
        %656 = vrot.lane.b32.xlu0 %v654, 1
        %v657 = vpop.permute.xlu0 %656
        %659 = vst.msk [vmem:[%s378] sm:$0x3] %vm639, %v657
        %v660 = vlaneseq
        %v661 = vshrl.u32 %v660, 7
        %v662 = vsub.s32 0, %v661
        %v663 = vrot.slane %v629, %v662
        %v664 = vmul.f32 %v416, %v663
        %665 = vst.msk [vmem:[%s385] sm:$0x3] %vm424, %v664
        %v666 = vlaneseq
        %v667 = vshrl.u32 %v666, 7
        %v668 = vsub.s32 0, %v667
        %v669 = vrot.slane %v630, %v668
        %v670 = vmul.f32 %v420, %v669
        %672 = vrot.lane.b32.xlu0 %v670, 1
        %v673 = vpop.permute.xlu0 %672
        %675 = vst.msk [vmem:[%s385] sm:$0x3] %vm639, %v673
        %s676 = scalar_lea.vmem %s4, 4
        %v677 = vld [vmem:[%s676] sm:$0x3]
        %v678 = vld [vmem:[%s676 + $0x2] sm:$0x3]
        %s679 = scalar_lea.vmem %s3, 4
        %v680 = vld [vmem:[%s679] sm:$0x3]
        %v681 = vld [vmem:[%s679 + $0x2] sm:$0x3]
        %683 = vrot.lane.b32.xlu0 %v678, 2
        %v684 = vpop.permute.xlu0 %683
        %vm686 = vcmask 17424
        %687 = vst.msk [vmem:[%s633] sm:$0x3] %vm686, %v684
        %689 = vrot.lane.b32.xlu0 %v681, 3
        %v690 = vpop.permute.xlu0 %689
        %vm692 = vcmask 25624
        %693 = vst.msk [vmem:[%s633] sm:$0x3] %vm692, %v690
        %694 = vst.msk [vmem:[%s641] sm:$0x3] %vm686, %v684
        %695 = vst.msk [vmem:[%s641] sm:$0x3] %vm692, %v690
        %v696 = vlaneseq
        %v697 = vshrl.u32 %v696, 7
        %v698 = vsub.s32 1, %v697
        %v699 = vrot.slane %v623, %v698
        %v700 = vmul.f32 %v677, %v699
        %702 = vrot.lane.b32.xlu0 %v700, 2
        %v703 = vpop.permute.xlu0 %702
        %705 = vst.msk [vmem:[%s378] sm:$0x3] %vm686, %v703
        %v706 = vlaneseq
        %v707 = vshrl.u32 %v706, 7
        %v708 = vsub.s32 1, %v707
        %v709 = vrot.slane %v624, %v708
        %v710 = vmul.f32 %v680, %v709
        %712 = vrot.lane.b32.xlu0 %v710, 3
        %v713 = vpop.permute.xlu0 %712
        %715 = vst.msk [vmem:[%s378] sm:$0x3] %vm692, %v713
        %v716 = vlaneseq
        %v717 = vshrl.u32 %v716, 7
        %v718 = vsub.s32 1, %v717
        %v719 = vrot.slane %v629, %v718
        %v720 = vmul.f32 %v677, %v719
        %722 = vrot.lane.b32.xlu0 %v720, 2
        %v723 = vpop.permute.xlu0 %722
        %725 = vst.msk [vmem:[%s385] sm:$0x3] %vm686, %v723
        %v726 = vlaneseq
        %v727 = vshrl.u32 %v726, 7
        %v728 = vsub.s32 1, %v727
        %v729 = vrot.slane %v630, %v728
        %v730 = vmul.f32 %v680, %v729
        %732 = vrot.lane.b32.xlu0 %v730, 3
        %v733 = vpop.permute.xlu0 %732
        %735 = vst.msk [vmem:[%s385] sm:$0x3] %vm692, %v733
        %vm736 = vcmask 33824
        %737 = vst.msk [vmem:[%s378] sm:$0x3] %vm736, 1.0
        %738 = vst.msk [vmem:[%s378 + $0x2] sm:$0x3] %vm736, 1.0
        %739 = vst.msk [vmem:[%s385] sm:$0x3] %vm736, 1.0
        %740 = vst.msk [vmem:[%s385 + $0x2] sm:$0x3] %vm736, 1.0
        %v741 = vlaneseq
        %v742 = vshrl.u32 %v741, 7
        %v743 = vsub.s32 0, %v742
        %v744 = vrot.slane %v631, %v743
        %746 = vrot.lane.b32.xlu0 %v744, 4
        %v747 = vpop.permute.xlu0 %746
        %749 = vst.msk [vmem:[%s378] sm:$0x3] %vm736, %v747
        %v750 = vlaneseq
        %v751 = vshrl.u32 %v750, 7
        %v752 = vsub.s32 0, %v751
        %v753 = vrot.slane %v632, %v752
        %755 = vrot.lane.b32.xlu0 %v753, 4
        %v756 = vpop.permute.xlu0 %755
        %758 = vst.msk [vmem:[%s385] sm:$0x3] %vm736, %v756
        %vm759 = vcmask 42024
        %760 = vst.msk [vmem:[%s378] sm:$0x3] %vm759, 1.0
        %761 = vst.msk [vmem:[%s378 + $0x2] sm:$0x3] %vm759, 1.0
        %762 = vst.msk [vmem:[%s385] sm:$0x3] %vm759, 1.0
        %763 = vst.msk [vmem:[%s385 + $0x2] sm:$0x3] %vm759, 1.0
        %764 = vst.msk [vmem:[%s378] sm:$0x3] %vm759, 0.0
        %v765 = vlaneseq
        %v766 = vshrl.u32 %v765, 7
        %v767 = vsub.s32 0, %v766
        %v768 = vrot.slane %v614, %v767
        %770 = vrot.lane.b32.xlu0 %v768, 5
        %v771 = vpop.permute.xlu0 %770
        %773 = vst.msk [vmem:[%s385] sm:$0x3] %vm759, %v771
        %v774 = vld [vmem:[%s5] sm:$0x3]
        %v775 = vld [vmem:[%s6] sm:$0x3]
        %v776 = vand.u32 2147483647, %v414
        %vm777 = vcmp.gt.f32.partialorder %v776, 0.0
        %v778 = vsel %vm777, 1, 0
        %v779 = vcvt.s32.f32 %v778
        %v780 = vand.u32 2147483647, %v413
        %vm781 = vcmp.gt.f32.partialorder %v780, 0.0
        %v782 = vsel %vm781, 1, 0
        %v783 = vcvt.s32.f32 %v782
        %785 = vset.pattern.permute.xlu0 0
        %786 = vperm.xlu0 %785, %v779
        %v787 = vpop.permute.xlu0 %786
        %v789 = vmul.f32 %v787, %v775
        %vm790 = vcmask 9216
        %v791 = vsel %vm790, %v789, -inf
        %v792 = vrot.slane %v791, 4
        %v793 = vmax.f32 %v791, %v792
        %v794 = vrot.slane %v793, 2
        %v795 = vmax.f32 %v793, %v794
        %v796 = vrot.slane %v795, 1
        %v797 = vmax.f32 %v795, %v796
        %799 = vset.pattern.permute.xlu0 0
        %800 = vperm.xlu0 %799, %v783
        %v801 = vpop.permute.xlu0 %800
        %v803 = vmul.f32 %v801, %v774
        %v804 = vsel %vm790, %v803, -inf
        %v805 = vrot.slane %v804, 4
        %v806 = vmax.f32 %v804, %v805
        %v807 = vrot.slane %v806, 2
        %v808 = vmax.f32 %v806, %v807
        %v809 = vrot.slane %v808, 1
        %v810 = vmax.f32 %v808, %v809
        %v811 = vmax.f32 %v797, %v810
        %v812 = vmul.f32 %v801, %v775
        %v813 = vsel %vm790, %v812, -inf
        %v814 = vrot.slane %v813, 4
        %v815 = vmax.f32 %v813, %v814
        %v816 = vrot.slane %v815, 2
        %v817 = vmax.f32 %v815, %v816
        %v818 = vrot.slane %v817, 1
        %v819 = vmax.f32 %v817, %v818
        %v820 = vmul.f32 %v787, %v774
        %v821 = vsel %vm790, %v820, -inf
        %v822 = vrot.slane %v821, 4
        %v823 = vmax.f32 %v821, %v822
        %v824 = vrot.slane %v823, 2
        %v825 = vmax.f32 %v823, %v824
        %v826 = vrot.slane %v825, 1
        %v827 = vmax.f32 %v825, %v826
        %v828 = vmax.f32 %v819, %v827
        %830 = vset.pattern.permute.xlu0 0
        %831 = vperm.xlu0 %830, %v618
        %v832 = vpop.permute.xlu0 %831
        %v834 = vmul.f32 %v811, %v832
        %vm835 = vcmask 8192
        %836 = vst.msk [vmem:[%s409] sm:$0x1] %vm835, %v834
        %v837 = vsel %vm600, 0.0, 1.0
        %839 = vset.pattern.permute.xlu0 0
        %840 = vperm.xlu0 %839, %v837
        %v841 = vpop.permute.xlu0 %840
        %v843 = vmul.f32 %v828, %v841
        %844 = vst.msk [vmem:[%s412] sm:$0x1] %vm835, %v843
        %s845 = sand.u32 %s198, 1
        %s846 = scalar_lea.sflag [#allocation3], %s845
        %s847 = sand.u32 %s198, 1
        %s848 = smul.addr %s847, 4
        %s849 = scalar_lea.vmem [#allocation2], %s848
        %s850 = sand.u32 %s224, 1
        %s851 = scalar_lea.sflag [#allocation5], %s850
        %s852 = sand.u32 %s224, 1
        %s853 = smul.addr %s852, 4
        %s854 = scalar_lea.vmem [#allocation4], %s853
        %p855 = scmp.lt.s32.totalorder %s28, 3
        %s856 = scalar_select %p855, %s28, 3
        %s857 = scalar_lea.vmem %s9, %s856
        %p858 = scmp.lt.s32.totalorder %s28, 3
        %s859 = scalar_select %p858, %s28, 3
        %s860 = scalar_lea.vmem %s10, %s859
        // Predicated region
        $region49: #{tpu_custom_call.1} parent=47 // pred_check
          %p861 = pneg %p208
        $region50: #{tpu_custom_call.1} parent=47 // pred_check_branch
          %863 = sbr.rel (%p861) target = $region52
        $region51: #{tpu_custom_call.1} parent=47 // pred_region
          %s865 = ssub.s32 64, 64
          %866 = vsyncadd %s846, %s865
          %s867 = smul.addr %s28, 2
          %s868 = smul.addr %s867, 32
          %s869 = scalar_lea.hbm %s7, %s868
          %s870 = sshll.u32 %s849, 4
          %s871 = int_to_ptr.vmem [resolvable:$true] %s870
          %876 = dma.vmem_to_hbm [thread:$0]  %s871, 64, %s869, %s846, 32, 32, 2
        $region52: #{tpu_custom_call.1} parent=47 // pred_fallthru
          _
        // Predicated region
        $region53: #{tpu_custom_call.1} parent=47 // pred_check
          %p877 = pneg %p234
        $region54: #{tpu_custom_call.1} parent=47 // pred_check_branch
          %879 = sbr.rel (%p877) target = $region56
        $region55: #{tpu_custom_call.1} parent=47 // pred_region
          %s881 = ssub.s32 64, 64
          %882 = vsyncadd %s851, %s881
          %s883 = smul.addr %s28, 2
          %s884 = smul.addr %s883, 32
          %s885 = scalar_lea.hbm %s8, %s884
          %s886 = sshll.u32 %s854, 4
          %s887 = int_to_ptr.vmem [resolvable:$true] %s886
          %892 = dma.vmem_to_hbm [thread:$0]  %s887, 64, %s885, %s851, 32, 32, 2
        $region56: #{tpu_custom_call.1} parent=47 // pred_fallthru
          _
        // Predicated region
        $region57: #{tpu_custom_call.1} parent=47 // pred_check
          %p893 = pneg %p260
        $region58: #{tpu_custom_call.1} parent=47 // pred_check_branch
          %895 = sbr.rel (%p893) target = $region60
        $region59: #{tpu_custom_call.1} parent=47 // pred_region
          _
        $region60: #{tpu_custom_call.1} parent=47 // pred_fallthru
          _
        // Predicated region
        $region61: #{tpu_custom_call.1} parent=47 // pred_check
          %p896 = pneg %p286
        $region62: #{tpu_custom_call.1} parent=47 // pred_check_branch
          %898 = sbr.rel (%p896) target = $region64
        $region63: #{tpu_custom_call.1} parent=47 // pred_region
          _
        $region64: #{tpu_custom_call.1} parent=47 // pred_fallthru
          _
      $region48: #{tpu_custom_call.1} parent=5 // pred_fallthru
        _
      %p899 = scmp.le.s32.totalorder 2, %s23
      // Predicated region
      $region65: #{tpu_custom_call.1} parent=5 // pred_check
        %p900 = pneg %p899
      $region66: #{tpu_custom_call.1} parent=5 // pred_check_branch
        %902 = sbr.rel (%p900) target = $region68
      $region67: #{tpu_custom_call.1} parent=5 // pred_region
        %s903 = ssub.s32 %s23, 2
        // Predicated region
        $region69: #{tpu_custom_call.1} parent=67 // pred_check
          %p904 = pneg %p214
        $region70: #{tpu_custom_call.1} parent=67 // pred_check_branch
          %906 = sbr.rel (%p904) target = $region72
        $region71: #{tpu_custom_call.1} parent=67 // pred_region
          %s907 = sand.u32 %s199, 1
          %s908 = scalar_lea.sflag [#allocation3], %s907
          %s909 = sand.u32 %s199, 1
          %s910 = smul.addr %s909, 4
          %s911 = scalar_lea.vmem [#allocation2], %s910
          %912 = dma.done %s908, 64
        $region72: #{tpu_custom_call.1} parent=67 // pred_fallthru
          _
        // Predicated region
        $region73: #{tpu_custom_call.1} parent=67 // pred_check
          %p913 = pneg %p240
        $region74: #{tpu_custom_call.1} parent=67 // pred_check_branch
          %915 = sbr.rel (%p913) target = $region76
        $region75: #{tpu_custom_call.1} parent=67 // pred_region
          %s916 = sand.u32 %s225, 1
          %s917 = scalar_lea.sflag [#allocation5], %s916
          %s918 = sand.u32 %s225, 1
          %s919 = smul.addr %s918, 4
          %s920 = scalar_lea.vmem [#allocation4], %s919
          %921 = dma.done %s917, 64
        $region76: #{tpu_custom_call.1} parent=67 // pred_fallthru
          _
        // Predicated region
        $region77: #{tpu_custom_call.1} parent=67 // pred_check
          %p922 = pneg %p266
        $region78: #{tpu_custom_call.1} parent=67 // pred_check_branch
          %924 = sbr.rel (%p922) target = $region80
        $region79: #{tpu_custom_call.1} parent=67 // pred_region
          %p925 = scmp.lt.s32.totalorder %s29, 3
          %s926 = scalar_select %p925, %s29, 3
          %s927 = scalar_lea.vmem %s9, %s926
        $region80: #{tpu_custom_call.1} parent=67 // pred_fallthru
          _
        // Predicated region
        $region81: #{tpu_custom_call.1} parent=67 // pred_check
          %p928 = pneg %p292
        $region82: #{tpu_custom_call.1} parent=67 // pred_check_branch
          %930 = sbr.rel (%p928) target = $region84
        $region83: #{tpu_custom_call.1} parent=67 // pred_region
          %p931 = scmp.lt.s32.totalorder %s29, 3
          %s932 = scalar_select %p931, %s29, 3
          %s933 = scalar_lea.vmem %s10, %s932
        $region84: #{tpu_custom_call.1} parent=67 // pred_fallthru
          _
      $region68: #{tpu_custom_call.1} parent=5 // pred_fallthru
        _
    $region6: #{tpu_custom_call.1} parent=1 // loop_footer
      %s27 = sadd.s32 1, %s23
    $region7: #{tpu_custom_call.1} parent=1 // loop_footer_branch
      %22 = sbr.rel target = $region3
    $region8: #{tpu_custom_call.1} parent=1 // loop_exit
      _
    %934 = vsyncpa [#allocation3], 1
    %s935 = scalar_lea.sflag [#allocation3], 1
    %936 = vsyncpa %s935, 1
    %937 = vsyncpa [#allocation5], 1
    %s938 = scalar_lea.sflag [#allocation5], 1
    %939 = vsyncpa %s938, 1

</llo_original>
